<compile_context>
chip_gen: v5e
topology: v5e:2x2
jax: 0.10.0
libtpu: 0.0.40
codegen_flags: <defaults>
</compile_context>

<pallas_src>
import functools
import math

import jax
import jax.numpy as jnp
from jax.experimental import pallas as pl
from jax.experimental.pallas import tpu as pltpu


# ----------------------------------------------------------------------------
# Fused Pallas kernel: [conv3x3 + noise + InstanceNorm/AdaIN + lrelu] x 2
# ----------------------------------------------------------------------------

def _styled_block_kernel(x_ref, noise_ref, masks_ref,
                         w1_ref, b1_ref, nw1_ref, g1_ref, bt1_ref,
                         w2_ref, b2_ref, nw2_ref, g2_ref, bt2_ref,
                         o_ref, halo1_ref, halo2_ref,
                         *, H, W, off, eps, neg_slope):
    """One batch element of the full StyledConv2DBlock.

    x_ref     : (1, Cin, HW)    flat input, f32 (channel-major, HW on lanes)
    noise_ref : (1, 1, HW)      flat noise row, f32 (broadcast over channels)
    masks_ref : (2, HW)         [left, right] column-edge masks for dx = -1/+1 taps
    w*_ref    : (9, Cout, Cin*) per-tap conv weights, equalized scales folded in
    b*_ref    : (Cout, 1)       folded conv bias
    nw*_ref   : (Cout, 1)       folded noise-injection weight
    g*_ref    : (1, Cout, 1)    AdaIN gamma for this batch element
    bt*_ref   : (1, Cout, 1)    AdaIN beta  for this batch element
    o_ref     : (1, Cout, HW)   output (lane-dense)
    halo*_ref : (Cin*, L)       flat zero-padded halo scratch (L = off + HW + W + 1)
    """
    HW = H * W
    noise_row = noise_ref[0]            # (1, HW)
    mask_l = masks_ref[0:1, :]          # (1, HW): 0 where output col j == 0
    mask_r = masks_ref[1:2, :]          # (1, HW): 0 where output col j == W-1

    def half(halo_ref, x_val, w_ref, b_val, nw_val, g_val, bt_val):
        # Stage the activation into the flat zero halo at a 128-aligned offset.
        halo_ref[...] = jnp.zeros_like(halo_ref)
        halo_ref[:, off:off + HW] = x_val

        cout = w_ref.shape[1]
        acc = jnp.zeros((cout, HW), jnp.float32)
        # 9 accumulating matmuls (one per 3x3 tap); windows are static lane
        # slices of the flat halo, column masks fix the width edges.
        for dy in range(3):
            for dx in range(3):
                k = dy * 3 + dx
                start = off + (dy - 1) * W + (dx - 1)
                win = halo_ref[:, start:start + HW]          # (Cin_half, HW)
                if dx == 0:
                    win = win * mask_l
                elif dx == 2:
                    win = win * mask_r
                acc = acc + jnp.dot(w_ref[k], win,
                                    preferred_element_type=jnp.float32)

        # EqualizedConv bias + equalized noise injection (scales pre-folded).
        y = acc + b_val + nw_val * noise_row                  # (Cout, HW)

        # InstanceNorm2d (biased var, two-pass) folded with the AdaIN affine.
        mean = jnp.mean(y, axis=1, keepdims=True)             # (Cout, 1)
        d = y - mean
        var = jnp.mean(d * d, axis=1, keepdims=True)
        inv = jax.lax.rsqrt(var + eps)
        out = d * (g_val * inv) + bt_val

        # LeakyReLU(0.2)
        return jnp.where(out >= 0.0, out, neg_slope * out)

    h1 = half(halo1_ref, x_ref[0],
              w1_ref, b1_ref[...], nw1_ref[...], g1_ref[0], bt1_ref[0])
    # Inter-half activation stays in VMEM (written into halo2 by `half`).
    h2 = half(halo2_ref, h1,
              w2_ref, b2_ref[...], nw2_ref[...], g2_ref[0], bt2_ref[0])

    o_ref[0] = h2.astype(o_ref.dtype)


def _styled_block_pallas(x_flat, noise_flat, masks,
                         w1, b1, nw1, g1, bt1,
                         w2, b2, nw2, g2, bt2, *, H, W):
    B, Cin, HW = x_flat.shape
    C = w1.shape[1]
    # 128-aligned interior offset so the big halo store is unmasked; the halo
    # needs >= W+1 zeros on each side of the image for the row taps.
    off = ((W + 1 + 127) // 128) * 128
    L = off + HW + W + 1

    kernel = functools.partial(_styled_block_kernel, H=H, W=W, off=off,
                               eps=1e-5, neg_slope=0.2)

    return pl.pallas_call(
        kernel,
        out_shape=jax.ShapeDtypeStruct((B, C, HW), jnp.float32),
        grid=(B,),
        in_specs=[
            pl.BlockSpec((1, Cin, HW), lambda b: (b, 0, 0)),   # x (flat, channel-major)
            pl.BlockSpec((1, 1, HW), lambda b: (b, 0, 0)),     # noise row
            pl.BlockSpec((2, HW), lambda b: (0, 0)),           # column-edge masks
            pl.BlockSpec((9, C, Cin), lambda b: (0, 0, 0)),    # conv1 taps (folded)
            pl.BlockSpec((C, 1), lambda b: (0, 0)),            # conv1 bias  (folded)
            pl.BlockSpec((C, 1), lambda b: (0, 0)),            # noise1 weight (folded)
            pl.BlockSpec((1, C, 1), lambda b: (b, 0, 0)),      # gamma1
            pl.BlockSpec((1, C, 1), lambda b: (b, 0, 0)),      # beta1
            pl.BlockSpec((9, C, C), lambda b: (0, 0, 0)),      # conv2 taps (folded)
            pl.BlockSpec((C, 1), lambda b: (0, 0)),            # conv2 bias  (folded)
            pl.BlockSpec((C, 1), lambda b: (0, 0)),            # noise2 weight (folded)
            pl.BlockSpec((1, C, 1), lambda b: (b, 0, 0)),      # gamma2
            pl.BlockSpec((1, C, 1), lambda b: (b, 0, 0)),      # beta2
        ],
        out_specs=pl.BlockSpec((1, C, HW), lambda b: (b, 0, 0)),
        scratch_shapes=[
            pltpu.VMEM((Cin, L), jnp.float32),   # half-1 flat halo
            pltpu.VMEM((C, L), jnp.float32),     # half-2 flat halo (holds inter-half act)
        ],
        compiler_params=pltpu.CompilerParams(
            dimension_semantics=("parallel",),
        ),
    )(x_flat, noise_flat, masks, w1, b1, nw1, g1, bt1, w2, b2, nw2, g2, bt2)


# ----------------------------------------------------------------------------
# Parameter setup (deterministic, mirrors the PyTorch __init__ semantics)
# ----------------------------------------------------------------------------

def init_params(key, in_channel, out_channel, style_dim, kernel_size=3):
    assert kernel_size == 3
    ks = jax.random.split(key, 6)
    C = out_channel

    def he(fan_in):
        return math.sqrt(2.0 / fan_in)

    # Conv / noise / style weights ~ N(0,1) (equalized LR); conv bias = 0;
    # style bias = [1]*C ++ [0]*C.
    conv1_w = jax.random.normal(ks[0], (C, in_channel, 3, 3), jnp.float32)
    conv2_w = jax.random.normal(ks[1], (C, C, 3, 3), jnp.float32)
    noise1_w = jax.random.normal(ks[2], (C,), jnp.float32)
    noise2_w = jax.random.normal(ks[3], (C,), jnp.float32)
    style1_w = jax.random.normal(ks[4], (2 * C, style_dim), jnp.float32)
    style2_w = jax.random.normal(ks[5], (2 * C, style_dim), jnp.float32)
    style_b = jnp.concatenate([jnp.ones((C,), jnp.float32), jnp.zeros((C,), jnp.float32)])
    conv_b = jnp.zeros((C,), jnp.float32)

    conv1_scale = he(in_channel * 9)
    conv2_scale = he(C * 9)
    noise_scale = he(C)
    style_scale = he(style_dim)

    def to_tap_mat(w_oihw, fold):
        # OIHW -> (ky, kx, Cout, Cin) -> (9, Cout, Cin); tap index k = ky*3 + kx.
        cout, cin = w_oihw.shape[0], w_oihw.shape[1]
        return jnp.transpose(w_oihw, (2, 3, 0, 1)).reshape(9, cout, cin) * fold

    return {
        # torch-layout parameters (pure-JAX reference path)
        "conv1_w_oihw": conv1_w, "conv2_w_oihw": conv2_w,
        "conv1_b": conv_b, "conv2_b": conv_b,
        "noise1_w": noise1_w, "noise2_w": noise2_w,
        "style1_w": style1_w, "style2_w": style2_w,
        "style1_b": style_b, "style2_b": style_b,
        "conv1_scale": conv1_scale, "conv2_scale": conv2_scale,
        "noise_scale": noise_scale, "style_scale": style_scale,
        # kernel-layout parameters (equalized-LR scales folded in at init)
        "w1_taps": to_tap_mat(conv1_w, conv1_scale * noise_scale),
        "w2_taps": to_tap_mat(conv2_w, conv2_scale * noise_scale),
        "b1_fold": (conv_b * conv1_scale * noise_scale).reshape(C, 1),
        "b2_fold": (conv_b * conv2_scale * noise_scale).reshape(C, 1),
        "nw1_fold": (noise1_w * noise_scale).reshape(C, 1),
        "nw2_fold": (noise2_w * noise_scale).reshape(C, 1),
    }


# ----------------------------------------------------------------------------
# Full forward pass (Pallas path) — public API is NCHW, like the PyTorch module
# ----------------------------------------------------------------------------

def styled_conv2d_block_forward(x_nchw, style, noise_nchw, p):
    B, Cin, H, W = x_nchw.shape
    C = p["noise1_w"].shape[0]
    HW = H * W

    # Lane-dense flat views; pure reshapes (no transpose, no pad).
    x_flat = x_nchw.reshape(B, Cin, HW)
    noise_flat = noise_nchw.reshape(B, 1, HW)

    # Column-edge masks for the dx = -1 / +1 conv taps (tiny constant array).
    col = jnp.arange(HW, dtype=jnp.int32) % W
    masks = jnp.stack([(col != 0), (col != W - 1)]).astype(jnp.float32)   # (2, HW)

    # EqualizedLinear style projection (far below MXU granularity -> plain XLA);
    # gamma/beta enter the fused kernel as (B, C, 1) arrays.
    def adain_params(sw, sb):
        st = (style @ sw.T + sb) * p["style_scale"]
        return st[:, :C, None], st[:, C:, None]

    g1, bt1 = adain_params(p["style1_w"], p["style1_b"])
    g2, bt2 = adain_params(p["style2_w"], p["style2_b"])

    out_flat = _styled_block_pallas(
        x_flat, noise_flat, masks,
        p["w1_taps"], p["b1_fold"], p["nw1_fold"], g1, bt1,
        p["w2_taps"], p["b2_fold"], p["nw2_fold"], g2, bt2,
        H=H, W=W)
    return out_flat.reshape(B, C, H, W)


# ----------------------------------------------------------------------------
# Pure-JAX reference (NCHW, unfolded scales, mirrors the PyTorch ops exactly)
# ----------------------------------------------------------------------------

def reference_forward(x, style, noise, p):
    def eq_conv(h, w, b, scale):
        y = jax.lax.conv_general_dilated(
            h, w, (1, 1), ((1, 1), (1, 1)),
            dimension_numbers=("NCHW", "OIHW", "NCHW"),
            precision=jax.lax.Precision.HIGHEST)
        return (y + b[None, :, None, None]) * scale

    def noise_adain_lrelu(y, nw, sw, sb):
        y = (y + nw[None, :, None, None] * noise) * p["noise_scale"]
        st = (style @ sw.T + sb) * p["style_scale"]
        C = nw.shape[0]
        gamma, beta = st[:, :C], st[:, C:]
        mean = jnp.mean(y, axis=(2, 3), keepdims=True)
        var = jnp.mean((y - mean) ** 2, axis=(2, 3), keepdims=True)
        norm = (y - mean) * jax.lax.rsqrt(var + 1e-5)
        out = gamma[:, :, None, None] * norm + beta[:, :, None, None]
        return jnp.where(out >= 0, out, 0.2 * out)

    h = eq_conv(x, p["conv1_w_oihw"], p["conv1_b"], p["conv1_scale"])
    h = noise_adain_lrelu(h, p["noise1_w"], p["style1_w"], p["style1_b"])
    h = eq_conv(h, p["conv2_w_oihw"], p["conv2_b"], p["conv2_scale"])
    h = noise_adain_lrelu(h, p["noise2_w"], p["style2_w"], p["style2_b"])
    return h


# ----------------------------------------------------------------------------

if __name__ == "__main__":
    B, Cin, Cout, H, W, S = 2, 4, 8, 16, 16, 32

    key = jax.random.PRNGKey(0)
    k_x, k_s, k_n, k_p = jax.random.split(key, 4)
    x = jax.random.normal(k_x, (B, Cin, H, W), jnp.float32)       # NCHW
    style = jax.random.normal(k_s, (B, S), jnp.float32)
    noise = jax.random.normal(k_n, (B, 1, H, W), jnp.float32)     # broadcast over C

    params = init_params(k_p, Cin, Cout, S)

    out = jax.block_until_ready(styled_conv2d_block_forward(x, style, noise, params))
    ref = jax.block_until_ready(reference_forward(x, style, noise, params))

    assert out.shape == (B, Cout, H, W), out.shape
    # Kernel math is f32 end to end; keep a conservative tolerance to cover the
    # TPU matmul pass precision.
    max_err = float(jnp.max(jnp.abs(out - ref)))
    ref_scale = float(jnp.max(jnp.abs(ref)))
    assert max_err <= 2e-2 * ref_scale + 1e-3, \
        f"max abs err {max_err} vs ref scale {ref_scale}"

    print("KERNEL_OK")
</pallas_src>

<mosaic_0001>
module attributes {stable_mosaic.version = 11 : i64} {
  func.func @_styled_block_kernel(%arg0: i32, %arg1: memref<1x4x256xf32, #tpu.memory_space<vmem>>, %arg2: memref<1x1x256xf32, #tpu.memory_space<vmem>>, %arg3: memref<2x256xf32, #tpu.memory_space<vmem>>, %arg4: memref<9x8x4xf32, #tpu.memory_space<vmem>>, %arg5: memref<8x1xf32, #tpu.memory_space<vmem>>, %arg6: memref<8x1xf32, #tpu.memory_space<vmem>>, %arg7: memref<1x8x1xf32, #tpu.memory_space<vmem>>, %arg8: memref<1x8x1xf32, #tpu.memory_space<vmem>>, %arg9: memref<9x8x8xf32, #tpu.memory_space<vmem>>, %arg10: memref<8x1xf32, #tpu.memory_space<vmem>>, %arg11: memref<8x1xf32, #tpu.memory_space<vmem>>, %arg12: memref<1x8x1xf32, #tpu.memory_space<vmem>>, %arg13: memref<1x8x1xf32, #tpu.memory_space<vmem>>, %arg14: memref<1x8x256xf32, #tpu.memory_space<vmem>>, %arg15: memref<4x401xf32, #tpu.memory_space<vmem>>, %arg16: memref<8x401xf32, #tpu.memory_space<vmem>>) attributes {dimension_semantics = [#tpu.dimension_semantics<parallel>], iteration_bounds = array<i64: 2>, scalar_prefetch = 0 : i64, scratch_operands = 2 : i64, tpu.core_type = #tpu.core_type<tc>, window_params = [{transform_indices = @transform_0, window_bounds = array<i64: 1, 4, 256>}, {transform_indices = @transform_1, window_bounds = array<i64: 1, 1, 256>}, {pipeline_mode = #tpu.pipeline_mode<synchronous>, transform_indices = @transform_2, window_bounds = array<i64: 2, 256>}, {pipeline_mode = #tpu.pipeline_mode<synchronous>, transform_indices = @transform_3, window_bounds = array<i64: 9, 8, 4>}, {pipeline_mode = #tpu.pipeline_mode<synchronous>, transform_indices = @transform_4, window_bounds = array<i64: 8, 1>}, {pipeline_mode = #tpu.pipeline_mode<synchronous>, transform_indices = @transform_5, window_bounds = array<i64: 8, 1>}, {transform_indices = @transform_6, window_bounds = array<i64: 1, 8, 1>}, {transform_indices = @transform_7, window_bounds = array<i64: 1, 8, 1>}, {pipeline_mode = #tpu.pipeline_mode<synchronous>, transform_indices = @transform_8, window_bounds = array<i64: 9, 8, 8>}, {pipeline_mode = #tpu.pipeline_mode<synchronous>, transform_indices = @transform_9, window_bounds = array<i64: 8, 1>}, {pipeline_mode = #tpu.pipeline_mode<synchronous>, transform_indices = @transform_10, window_bounds = array<i64: 8, 1>}, {transform_indices = @transform_11, window_bounds = array<i64: 1, 8, 1>}, {transform_indices = @transform_12, window_bounds = array<i64: 1, 8, 1>}, {transform_indices = @transform_13, window_bounds = array<i64: 1, 8, 256>}]} {
    %c0 = arith.constant 0 : index
    %c0_0 = arith.constant 0 : index
    %c0_1 = arith.constant 0 : index
    %0 = vector.load %arg2[%c0, %c0_0, %c0_1] : memref<1x1x256xf32, #tpu.memory_space<vmem>>, vector<1x1x256xf32>
    %1 = vector.shape_cast %0 : vector<1x1x256xf32> to vector<1x256xf32>
    %c0_2 = arith.constant 0 : index
    %c0_3 = arith.constant 0 : index
    %2 = vector.load %arg3[%c0_2, %c0_3] : memref<2x256xf32, #tpu.memory_space<vmem>>, vector<1x256xf32>
    %c1 = arith.constant 1 : index
    %c0_4 = arith.constant 0 : index
    %3 = vector.load %arg3[%c1, %c0_4] : memref<2x256xf32, #tpu.memory_space<vmem>>, vector<1x256xf32>
    %c0_5 = arith.constant 0 : index
    %c0_6 = arith.constant 0 : index
    %c0_7 = arith.constant 0 : index
    %4 = vector.load %arg1[%c0_5, %c0_6, %c0_7] : memref<1x4x256xf32, #tpu.memory_space<vmem>>, vector<1x4x256xf32>
    %5 = vector.shape_cast %4 : vector<1x4x256xf32> to vector<4x256xf32>
    %c0_8 = arith.constant 0 : index
    %c0_9 = arith.constant 0 : index
    %6 = vector.load %arg5[%c0_8, %c0_9] : memref<8x1xf32, #tpu.memory_space<vmem>>, vector<8x1xf32>
    %c0_10 = arith.constant 0 : index
    %c0_11 = arith.constant 0 : index
    %7 = vector.load %arg6[%c0_10, %c0_11] : memref<8x1xf32, #tpu.memory_space<vmem>>, vector<8x1xf32>
    %c0_12 = arith.constant 0 : index
    %c0_13 = arith.constant 0 : index
    %c0_14 = arith.constant 0 : index
    %8 = vector.load %arg7[%c0_12, %c0_13, %c0_14] : memref<1x8x1xf32, #tpu.memory_space<vmem>>, vector<1x8x1xf32>
    %9 = vector.shape_cast %8 : vector<1x8x1xf32> to vector<8x1xf32>
    %c0_15 = arith.constant 0 : index
    %c0_16 = arith.constant 0 : index
    %c0_17 = arith.constant 0 : index
    %10 = vector.load %arg8[%c0_15, %c0_16, %c0_17] : memref<1x8x1xf32, #tpu.memory_space<vmem>>, vector<1x8x1xf32>
    %11 = vector.shape_cast %10 : vector<1x8x1xf32> to vector<8x1xf32>
    %cst = arith.constant 0.000000e+00 : f32
    %12 = vector.broadcast %cst : f32 to vector<4x401xf32>
    %c0_18 = arith.constant 0 : index
    %c0_19 = arith.constant 0 : index
    %13 = vector.load %arg15[%c0_18, %c0_19] : memref<4x401xf32, #tpu.memory_space<vmem>>, vector<4x401xf32>
    tpu.vector_store %arg15[%c0_18, %c0_19], %12 {strides = array<i32>} : memref<4x401xf32, #tpu.memory_space<vmem>>, vector<4x401xf32>,
    %c0_20 = arith.constant 0 : index
    %c128 = arith.constant 128 : index
    %14 = vector.load %arg15[%c0_20, %c128] : memref<4x401xf32, #tpu.memory_space<vmem>>, vector<4x256xf32>
    tpu.vector_store %arg15[%c0_20, %c128], %5 {strides = array<i32>} : memref<4x401xf32, #tpu.memory_space<vmem>>, vector<4x256xf32>,
    %cst_21 = arith.constant 0.000000e+00 : f32
    %15 = vector.broadcast %cst_21 : f32 to vector<8x256xf32>
    %c0_22 = arith.constant 0 : index
    %c111 = arith.constant 111 : index
    %16 = vector.load %arg15[%c0_22, %c111] : memref<4x401xf32, #tpu.memory_space<vmem>>, vector<4x256xf32>
    %17 = vector.broadcast %2 : vector<1x256xf32> to vector<4x256xf32>
    %18 = arith.mulf %16, %17 : vector<4x256xf32>
    %c0_23 = arith.constant 0 : index
    %c0_24 = arith.constant 0 : index
    %c0_25 = arith.constant 0 : index
    %19 = vector.load %arg4[%c0_23, %c0_24, %c0_25] : memref<9x8x4xf32, #tpu.memory_space<vmem>>, vector<1x8x4xf32>
    %20 = vector.shape_cast %19 : vector<1x8x4xf32> to vector<8x4xf32>
    %cst_26 = arith.constant dense<0.000000e+00> : vector<8x256xf32>
    %21 = tpu.matmul %20, %18, %cst_26 {dimension_numbers = #tpu.dot_dimension_numbers<[1], [0], [0], [1], [0, 0, 1, 1], [], []>} : vector<8x4xf32>, vector<4x256xf32>, vector<8x256xf32> -> vector<8x256xf32>
    %22 = arith.addf %15, %21 : vector<8x256xf32>
    %c0_27 = arith.constant 0 : index
    %c112 = arith.constant 112 : index
    %23 = vector.load %arg15[%c0_27, %c112] : memref<4x401xf32, #tpu.memory_space<vmem>>, vector<4x256xf32>
    %c1_28 = arith.constant 1 : index
    %c0_29 = arith.constant 0 : index
    %c0_30 = arith.constant 0 : index
    %24 = vector.load %arg4[%c1_28, %c0_29, %c0_30] : memref<9x8x4xf32, #tpu.memory_space<vmem>>, vector<1x8x4xf32>
    %25 = vector.shape_cast %24 : vector<1x8x4xf32> to vector<8x4xf32>
    %cst_31 = arith.constant dense<0.000000e+00> : vector<8x256xf32>
    %26 = tpu.matmul %25, %23, %cst_31 {dimension_numbers = #tpu.dot_dimension_numbers<[1], [0], [0], [1], [0, 0, 1, 1], [], []>} : vector<8x4xf32>, vector<4x256xf32>, vector<8x256xf32> -> vector<8x256xf32>
    %27 = arith.addf %22, %26 : vector<8x256xf32>
    %c0_32 = arith.constant 0 : index
    %c113 = arith.constant 113 : index
    %28 = vector.load %arg15[%c0_32, %c113] : memref<4x401xf32, #tpu.memory_space<vmem>>, vector<4x256xf32>
    %29 = vector.broadcast %3 : vector<1x256xf32> to vector<4x256xf32>
    %30 = arith.mulf %28, %29 : vector<4x256xf32>
    %c2 = arith.constant 2 : index
    %c0_33 = arith.constant 0 : index
    %c0_34 = arith.constant 0 : index
    %31 = vector.load %arg4[%c2, %c0_33, %c0_34] : memref<9x8x4xf32, #tpu.memory_space<vmem>>, vector<1x8x4xf32>
    %32 = vector.shape_cast %31 : vector<1x8x4xf32> to vector<8x4xf32>
    %cst_35 = arith.constant dense<0.000000e+00> : vector<8x256xf32>
    %33 = tpu.matmul %32, %30, %cst_35 {dimension_numbers = #tpu.dot_dimension_numbers<[1], [0], [0], [1], [0, 0, 1, 1], [], []>} : vector<8x4xf32>, vector<4x256xf32>, vector<8x256xf32> -> vector<8x256xf32>
    %34 = arith.addf %27, %33 : vector<8x256xf32>
    %c0_36 = arith.constant 0 : index
    %c127 = arith.constant 127 : index
    %35 = vector.load %arg15[%c0_36, %c127] : memref<4x401xf32, #tpu.memory_space<vmem>>, vector<4x256xf32>
    %36 = vector.broadcast %2 : vector<1x256xf32> to vector<4x256xf32>
    %37 = arith.mulf %35, %36 : vector<4x256xf32>
    %c3 = arith.constant 3 : index
    %c0_37 = arith.constant 0 : index
    %c0_38 = arith.constant 0 : index
    %38 = vector.load %arg4[%c3, %c0_37, %c0_38] : memref<9x8x4xf32, #tpu.memory_space<vmem>>, vector<1x8x4xf32>
    %39 = vector.shape_cast %38 : vector<1x8x4xf32> to vector<8x4xf32>
    %cst_39 = arith.constant dense<0.000000e+00> : vector<8x256xf32>
    %40 = tpu.matmul %39, %37, %cst_39 {dimension_numbers = #tpu.dot_dimension_numbers<[1], [0], [0], [1], [0, 0, 1, 1], [], []>} : vector<8x4xf32>, vector<4x256xf32>, vector<8x256xf32> -> vector<8x256xf32>
    %41 = arith.addf %34, %40 : vector<8x256xf32>
    %c0_40 = arith.constant 0 : index
    %c128_41 = arith.constant 128 : index
    %42 = vector.load %arg15[%c0_40, %c128_41] : memref<4x401xf32, #tpu.memory_space<vmem>>, vector<4x256xf32>
    %c4 = arith.constant 4 : index
    %c0_42 = arith.constant 0 : index
    %c0_43 = arith.constant 0 : index
    %43 = vector.load %arg4[%c4, %c0_42, %c0_43] : memref<9x8x4xf32, #tpu.memory_space<vmem>>, vector<1x8x4xf32>
    %44 = vector.shape_cast %43 : vector<1x8x4xf32> to vector<8x4xf32>
    %cst_44 = arith.constant dense<0.000000e+00> : vector<8x256xf32>
    %45 = tpu.matmul %44, %42, %cst_44 {dimension_numbers = #tpu.dot_dimension_numbers<[1], [0], [0], [1], [0, 0, 1, 1], [], []>} : vector<8x4xf32>, vector<4x256xf32>, vector<8x256xf32> -> vector<8x256xf32>
    %46 = arith.addf %41, %45 : vector<8x256xf32>
    %c0_45 = arith.constant 0 : index
    %c129 = arith.constant 129 : index
    %47 = vector.load %arg15[%c0_45, %c129] : memref<4x401xf32, #tpu.memory_space<vmem>>, vector<4x256xf32>
    %48 = vector.broadcast %3 : vector<1x256xf32> to vector<4x256xf32>
    %49 = arith.mulf %47, %48 : vector<4x256xf32>
    %c5 = arith.constant 5 : index
    %c0_46 = arith.constant 0 : index
    %c0_47 = arith.constant 0 : index
    %50 = vector.load %arg4[%c5, %c0_46, %c0_47] : memref<9x8x4xf32, #tpu.memory_space<vmem>>, vector<1x8x4xf32>
    %51 = vector.shape_cast %50 : vector<1x8x4xf32> to vector<8x4xf32>
    %cst_48 = arith.constant dense<0.000000e+00> : vector<8x256xf32>
    %52 = tpu.matmul %51, %49, %cst_48 {dimension_numbers = #tpu.dot_dimension_numbers<[1], [0], [0], [1], [0, 0, 1, 1], [], []>} : vector<8x4xf32>, vector<4x256xf32>, vector<8x256xf32> -> vector<8x256xf32>
    %53 = arith.addf %46, %52 : vector<8x256xf32>
    %c0_49 = arith.constant 0 : index
    %c143 = arith.constant 143 : index
    %54 = vector.load %arg15[%c0_49, %c143] : memref<4x401xf32, #tpu.memory_space<vmem>>, vector<4x256xf32>
    %55 = vector.broadcast %2 : vector<1x256xf32> to vector<4x256xf32>
    %56 = arith.mulf %54, %55 : vector<4x256xf32>
    %c6 = arith.constant 6 : index
    %c0_50 = arith.constant 0 : index
    %c0_51 = arith.constant 0 : index
    %57 = vector.load %arg4[%c6, %c0_50, %c0_51] : memref<9x8x4xf32, #tpu.memory_space<vmem>>, vector<1x8x4xf32>
    %58 = vector.shape_cast %57 : vector<1x8x4xf32> to vector<8x4xf32>
    %cst_52 = arith.constant dense<0.000000e+00> : vector<8x256xf32>
    %59 = tpu.matmul %58, %56, %cst_52 {dimension_numbers = #tpu.dot_dimension_numbers<[1], [0], [0], [1], [0, 0, 1, 1], [], []>} : vector<8x4xf32>, vector<4x256xf32>, vector<8x256xf32> -> vector<8x256xf32>
    %60 = arith.addf %53, %59 : vector<8x256xf32>
    %c0_53 = arith.constant 0 : index
    %c144 = arith.constant 144 : index
    %61 = vector.load %arg15[%c0_53, %c144] : memref<4x401xf32, #tpu.memory_space<vmem>>, vector<4x256xf32>
    %c7 = arith.constant 7 : index
    %c0_54 = arith.constant 0 : index
    %c0_55 = arith.constant 0 : index
    %62 = vector.load %arg4[%c7, %c0_54, %c0_55] : memref<9x8x4xf32, #tpu.memory_space<vmem>>, vector<1x8x4xf32>
    %63 = vector.shape_cast %62 : vector<1x8x4xf32> to vector<8x4xf32>
    %cst_56 = arith.constant dense<0.000000e+00> : vector<8x256xf32>
    %64 = tpu.matmul %63, %61, %cst_56 {dimension_numbers = #tpu.dot_dimension_numbers<[1], [0], [0], [1], [0, 0, 1, 1], [], []>} : vector<8x4xf32>, vector<4x256xf32>, vector<8x256xf32> -> vector<8x256xf32>
    %65 = arith.addf %60, %64 : vector<8x256xf32>
    %c0_57 = arith.constant 0 : index
    %c145 = arith.constant 145 : index
    %66 = vector.load %arg15[%c0_57, %c145] : memref<4x401xf32, #tpu.memory_space<vmem>>, vector<4x256xf32>
    %67 = vector.broadcast %3 : vector<1x256xf32> to vector<4x256xf32>
    %68 = arith.mulf %66, %67 : vector<4x256xf32>
    %c8 = arith.constant 8 : index
    %c0_58 = arith.constant 0 : index
    %c0_59 = arith.constant 0 : index
    %69 = vector.load %arg4[%c8, %c0_58, %c0_59] : memref<9x8x4xf32, #tpu.memory_space<vmem>>, vector<1x8x4xf32>
    %70 = vector.shape_cast %69 : vector<1x8x4xf32> to vector<8x4xf32>
    %cst_60 = arith.constant dense<0.000000e+00> : vector<8x256xf32>
    %71 = tpu.matmul %70, %68, %cst_60 {dimension_numbers = #tpu.dot_dimension_numbers<[1], [0], [0], [1], [0, 0, 1, 1], [], []>} : vector<8x4xf32>, vector<4x256xf32>, vector<8x256xf32> -> vector<8x256xf32>
    %72 = arith.addf %65, %71 : vector<8x256xf32>
    %73 = vector.broadcast %6 : vector<8x1xf32> to vector<8x256xf32>
    %74 = arith.addf %72, %73 : vector<8x256xf32>
    %75 = vector.broadcast %7 : vector<8x1xf32> to vector<8x256xf32>
    %76 = vector.broadcast %1 : vector<1x256xf32> to vector<8x256xf32>
    %77 = arith.mulf %75, %76 : vector<8x256xf32>
    %78 = arith.addf %74, %77 : vector<8x256xf32>
    %cst_61 = arith.constant dense<0.000000e+00> : vector<8xf32>
    %79 = vector.multi_reduction <add>, %78, %cst_61 [1] : vector<8x256xf32> to vector<8xf32>
    %80 = vector.shape_cast %79 : vector<8xf32> to vector<8x1xf32>
    %cst_62 = arith.constant 2.560000e+02 : f32
    %81 = vector.broadcast %cst_62 : f32 to vector<8x1xf32>
    %82 = arith.divf %80, %81 : vector<8x1xf32>
    %83 = vector.broadcast %82 : vector<8x1xf32> to vector<8x256xf32>
    %84 = arith.subf %78, %83 : vector<8x256xf32>
    %85 = arith.mulf %84, %84 : vector<8x256xf32>
    %cst_63 = arith.constant dense<0.000000e+00> : vector<8xf32>
    %86 = vector.multi_reduction <add>, %85, %cst_63 [1] : vector<8x256xf32> to vector<8xf32>
    %87 = vector.shape_cast %86 : vector<8xf32> to vector<8x1xf32>
    %cst_64 = arith.constant 2.560000e+02 : f32
    %88 = vector.broadcast %cst_64 : f32 to vector<8x1xf32>
    %89 = arith.divf %87, %88 : vector<8x1xf32>
    %cst_65 = arith.constant 9.99999974E-6 : f32
    %90 = vector.broadcast %cst_65 : f32 to vector<8x1xf32>
    %91 = arith.addf %89, %90 : vector<8x1xf32>
    %92 = math.rsqrt %91 : vector<8x1xf32>
    %93 = arith.mulf %9, %92 : vector<8x1xf32>
    %94 = vector.broadcast %93 : vector<8x1xf32> to vector<8x256xf32>
    %95 = arith.mulf %84, %94 : vector<8x256xf32>
    %96 = vector.broadcast %11 : vector<8x1xf32> to vector<8x256xf32>
    %97 = arith.addf %95, %96 : vector<8x256xf32>
    %cst_66 = arith.constant 0.000000e+00 : f32
    %98 = vector.broadcast %cst_66 : f32 to vector<8x256xf32>
    %99 = arith.cmpf oge, %97, %98 : vector<8x256xf32>
    %cst_67 = arith.constant 2.000000e-01 : f32
    %100 = vector.broadcast %cst_67 : f32 to vector<8x256xf32>
    %101 = arith.mulf %100, %97 : vector<8x256xf32>
    %102 = arith.select %99, %97, %101 : vector<8x256xi1>, vector<8x256xf32>
    %c0_68 = arith.constant 0 : index
    %c0_69 = arith.constant 0 : index
    %103 = vector.load %arg10[%c0_68, %c0_69] : memref<8x1xf32, #tpu.memory_space<vmem>>, vector<8x1xf32>
    %c0_70 = arith.constant 0 : index
    %c0_71 = arith.constant 0 : index
    %104 = vector.load %arg11[%c0_70, %c0_71] : memref<8x1xf32, #tpu.memory_space<vmem>>, vector<8x1xf32>
    %c0_72 = arith.constant 0 : index
    %c0_73 = arith.constant 0 : index
    %c0_74 = arith.constant 0 : index
    %105 = vector.load %arg12[%c0_72, %c0_73, %c0_74] : memref<1x8x1xf32, #tpu.memory_space<vmem>>, vector<1x8x1xf32>
    %106 = vector.shape_cast %105 : vector<1x8x1xf32> to vector<8x1xf32>
    %c0_75 = arith.constant 0 : index
    %c0_76 = arith.constant 0 : index
    %c0_77 = arith.constant 0 : index
    %107 = vector.load %arg13[%c0_75, %c0_76, %c0_77] : memref<1x8x1xf32, #tpu.memory_space<vmem>>, vector<1x8x1xf32>
    %108 = vector.shape_cast %107 : vector<1x8x1xf32> to vector<8x1xf32>
    %cst_78 = arith.constant 0.000000e+00 : f32
    %109 = vector.broadcast %cst_78 : f32 to vector<8x401xf32>
    %c0_79 = arith.constant 0 : index
    %c0_80 = arith.constant 0 : index
    %110 = vector.load %arg16[%c0_79, %c0_80] : memref<8x401xf32, #tpu.memory_space<vmem>>, vector<8x401xf32>
    tpu.vector_store %arg16[%c0_79, %c0_80], %109 {strides = array<i32>} : memref<8x401xf32, #tpu.memory_space<vmem>>, vector<8x401xf32>,
    %c0_81 = arith.constant 0 : index
    %c128_82 = arith.constant 128 : index
    %111 = vector.load %arg16[%c0_81, %c128_82] : memref<8x401xf32, #tpu.memory_space<vmem>>, vector<8x256xf32>
    tpu.vector_store %arg16[%c0_81, %c128_82], %102 {strides = array<i32>} : memref<8x401xf32, #tpu.memory_space<vmem>>, vector<8x256xf32>,
    %cst_83 = arith.constant 0.000000e+00 : f32
    %112 = vector.broadcast %cst_83 : f32 to vector<8x256xf32>
    %c0_84 = arith.constant 0 : index
    %c111_85 = arith.constant 111 : index
    %113 = vector.load %arg16[%c0_84, %c111_85] : memref<8x401xf32, #tpu.memory_space<vmem>>, vector<8x256xf32>
    %114 = vector.broadcast %2 : vector<1x256xf32> to vector<8x256xf32>
    %115 = arith.mulf %113, %114 : vector<8x256xf32>
    %c0_86 = arith.constant 0 : index
    %c0_87 = arith.constant 0 : index
    %c0_88 = arith.constant 0 : index
    %116 = vector.load %arg9[%c0_86, %c0_87, %c0_88] : memref<9x8x8xf32, #tpu.memory_space<vmem>>, vector<1x8x8xf32>
    %117 = vector.shape_cast %116 : vector<1x8x8xf32> to vector<8x8xf32>
    %cst_89 = arith.constant dense<0.000000e+00> : vector<8x256xf32>
    %118 = tpu.matmul %117, %115, %cst_89 {dimension_numbers = #tpu.dot_dimension_numbers<[1], [0], [0], [1], [0, 0, 1, 1], [], []>} : vector<8x8xf32>, vector<8x256xf32>, vector<8x256xf32> -> vector<8x256xf32>
    %119 = arith.addf %112, %118 : vector<8x256xf32>
    %c0_90 = arith.constant 0 : index
    %c112_91 = arith.constant 112 : index
    %120 = vector.load %arg16[%c0_90, %c112_91] : memref<8x401xf32, #tpu.memory_space<vmem>>, vector<8x256xf32>
    %c1_92 = arith.constant 1 : index
    %c0_93 = arith.constant 0 : index
    %c0_94 = arith.constant 0 : index
    %121 = vector.load %arg9[%c1_92, %c0_93, %c0_94] : memref<9x8x8xf32, #tpu.memory_space<vmem>>, vector<1x8x8xf32>
    %122 = vector.shape_cast %121 : vector<1x8x8xf32> to vector<8x8xf32>
    %cst_95 = arith.constant dense<0.000000e+00> : vector<8x256xf32>
    %123 = tpu.matmul %122, %120, %cst_95 {dimension_numbers = #tpu.dot_dimension_numbers<[1], [0], [0], [1], [0, 0, 1, 1], [], []>} : vector<8x8xf32>, vector<8x256xf32>, vector<8x256xf32> -> vector<8x256xf32>
    %124 = arith.addf %119, %123 : vector<8x256xf32>
    %c0_96 = arith.constant 0 : index
    %c113_97 = arith.constant 113 : index
    %125 = vector.load %arg16[%c0_96, %c113_97] : memref<8x401xf32, #tpu.memory_space<vmem>>, vector<8x256xf32>
    %126 = vector.broadcast %3 : vector<1x256xf32> to vector<8x256xf32>
    %127 = arith.mulf %125, %126 : vector<8x256xf32>
    %c2_98 = arith.constant 2 : index
    %c0_99 = arith.constant 0 : index
    %c0_100 = arith.constant 0 : index
    %128 = vector.load %arg9[%c2_98, %c0_99, %c0_100] : memref<9x8x8xf32, #tpu.memory_space<vmem>>, vector<1x8x8xf32>
    %129 = vector.shape_cast %128 : vector<1x8x8xf32> to vector<8x8xf32>
    %cst_101 = arith.constant dense<0.000000e+00> : vector<8x256xf32>
    %130 = tpu.matmul %129, %127, %cst_101 {dimension_numbers = #tpu.dot_dimension_numbers<[1], [0], [0], [1], [0, 0, 1, 1], [], []>} : vector<8x8xf32>, vector<8x256xf32>, vector<8x256xf32> -> vector<8x256xf32>
    %131 = arith.addf %124, %130 : vector<8x256xf32>
    %c0_102 = arith.constant 0 : index
    %c127_103 = arith.constant 127 : index
    %132 = vector.load %arg16[%c0_102, %c127_103] : memref<8x401xf32, #tpu.memory_space<vmem>>, vector<8x256xf32>
    %133 = vector.broadcast %2 : vector<1x256xf32> to vector<8x256xf32>
    %134 = arith.mulf %132, %133 : vector<8x256xf32>
    %c3_104 = arith.constant 3 : index
    %c0_105 = arith.constant 0 : index
    %c0_106 = arith.constant 0 : index
    %135 = vector.load %arg9[%c3_104, %c0_105, %c0_106] : memref<9x8x8xf32, #tpu.memory_space<vmem>>, vector<1x8x8xf32>
    %136 = vector.shape_cast %135 : vector<1x8x8xf32> to vector<8x8xf32>
    %cst_107 = arith.constant dense<0.000000e+00> : vector<8x256xf32>
    %137 = tpu.matmul %136, %134, %cst_107 {dimension_numbers = #tpu.dot_dimension_numbers<[1], [0], [0], [1], [0, 0, 1, 1], [], []>} : vector<8x8xf32>, vector<8x256xf32>, vector<8x256xf32> -> vector<8x256xf32>
    %138 = arith.addf %131, %137 : vector<8x256xf32>
    %c0_108 = arith.constant 0 : index
    %c128_109 = arith.constant 128 : index
    %139 = vector.load %arg16[%c0_108, %c128_109] : memref<8x401xf32, #tpu.memory_space<vmem>>, vector<8x256xf32>
    %c4_110 = arith.constant 4 : index
    %c0_111 = arith.constant 0 : index
    %c0_112 = arith.constant 0 : index
    %140 = vector.load %arg9[%c4_110, %c0_111, %c0_112] : memref<9x8x8xf32, #tpu.memory_space<vmem>>, vector<1x8x8xf32>
    %141 = vector.shape_cast %140 : vector<1x8x8xf32> to vector<8x8xf32>
    %cst_113 = arith.constant dense<0.000000e+00> : vector<8x256xf32>
    %142 = tpu.matmul %141, %139, %cst_113 {dimension_numbers = #tpu.dot_dimension_numbers<[1], [0], [0], [1], [0, 0, 1, 1], [], []>} : vector<8x8xf32>, vector<8x256xf32>, vector<8x256xf32> -> vector<8x256xf32>
    %143 = arith.addf %138, %142 : vector<8x256xf32>
    %c0_114 = arith.constant 0 : index
    %c129_115 = arith.constant 129 : index
    %144 = vector.load %arg16[%c0_114, %c129_115] : memref<8x401xf32, #tpu.memory_space<vmem>>, vector<8x256xf32>
    %145 = vector.broadcast %3 : vector<1x256xf32> to vector<8x256xf32>
    %146 = arith.mulf %144, %145 : vector<8x256xf32>
    %c5_116 = arith.constant 5 : index
    %c0_117 = arith.constant 0 : index
    %c0_118 = arith.constant 0 : index
    %147 = vector.load %arg9[%c5_116, %c0_117, %c0_118] : memref<9x8x8xf32, #tpu.memory_space<vmem>>, vector<1x8x8xf32>
    %148 = vector.shape_cast %147 : vector<1x8x8xf32> to vector<8x8xf32>
    %cst_119 = arith.constant dense<0.000000e+00> : vector<8x256xf32>
    %149 = tpu.matmul %148, %146, %cst_119 {dimension_numbers = #tpu.dot_dimension_numbers<[1], [0], [0], [1], [0, 0, 1, 1], [], []>} : vector<8x8xf32>, vector<8x256xf32>, vector<8x256xf32> -> vector<8x256xf32>
    %150 = arith.addf %143, %149 : vector<8x256xf32>
    %c0_120 = arith.constant 0 : index
    %c143_121 = arith.constant 143 : index
    %151 = vector.load %arg16[%c0_120, %c143_121] : memref<8x401xf32, #tpu.memory_space<vmem>>, vector<8x256xf32>
    %152 = vector.broadcast %2 : vector<1x256xf32> to vector<8x256xf32>
    %153 = arith.mulf %151, %152 : vector<8x256xf32>
    %c6_122 = arith.constant 6 : index
    %c0_123 = arith.constant 0 : index
    %c0_124 = arith.constant 0 : index
    %154 = vector.load %arg9[%c6_122, %c0_123, %c0_124] : memref<9x8x8xf32, #tpu.memory_space<vmem>>, vector<1x8x8xf32>
    %155 = vector.shape_cast %154 : vector<1x8x8xf32> to vector<8x8xf32>
    %cst_125 = arith.constant dense<0.000000e+00> : vector<8x256xf32>
    %156 = tpu.matmul %155, %153, %cst_125 {dimension_numbers = #tpu.dot_dimension_numbers<[1], [0], [0], [1], [0, 0, 1, 1], [], []>} : vector<8x8xf32>, vector<8x256xf32>, vector<8x256xf32> -> vector<8x256xf32>
    %157 = arith.addf %150, %156 : vector<8x256xf32>
    %c0_126 = arith.constant 0 : index
    %c144_127 = arith.constant 144 : index
    %158 = vector.load %arg16[%c0_126, %c144_127] : memref<8x401xf32, #tpu.memory_space<vmem>>, vector<8x256xf32>
    %c7_128 = arith.constant 7 : index
    %c0_129 = arith.constant 0 : index
    %c0_130 = arith.constant 0 : index
    %159 = vector.load %arg9[%c7_128, %c0_129, %c0_130] : memref<9x8x8xf32, #tpu.memory_space<vmem>>, vector<1x8x8xf32>
    %160 = vector.shape_cast %159 : vector<1x8x8xf32> to vector<8x8xf32>
    %cst_131 = arith.constant dense<0.000000e+00> : vector<8x256xf32>
    %161 = tpu.matmul %160, %158, %cst_131 {dimension_numbers = #tpu.dot_dimension_numbers<[1], [0], [0], [1], [0, 0, 1, 1], [], []>} : vector<8x8xf32>, vector<8x256xf32>, vector<8x256xf32> -> vector<8x256xf32>
    %162 = arith.addf %157, %161 : vector<8x256xf32>
    %c0_132 = arith.constant 0 : index
    %c145_133 = arith.constant 145 : index
    %163 = vector.load %arg16[%c0_132, %c145_133] : memref<8x401xf32, #tpu.memory_space<vmem>>, vector<8x256xf32>
    %164 = vector.broadcast %3 : vector<1x256xf32> to vector<8x256xf32>
    %165 = arith.mulf %163, %164 : vector<8x256xf32>
    %c8_134 = arith.constant 8 : index
    %c0_135 = arith.constant 0 : index
    %c0_136 = arith.constant 0 : index
    %166 = vector.load %arg9[%c8_134, %c0_135, %c0_136] : memref<9x8x8xf32, #tpu.memory_space<vmem>>, vector<1x8x8xf32>
    %167 = vector.shape_cast %166 : vector<1x8x8xf32> to vector<8x8xf32>
    %cst_137 = arith.constant dense<0.000000e+00> : vector<8x256xf32>
    %168 = tpu.matmul %167, %165, %cst_137 {dimension_numbers = #tpu.dot_dimension_numbers<[1], [0], [0], [1], [0, 0, 1, 1], [], []>} : vector<8x8xf32>, vector<8x256xf32>, vector<8x256xf32> -> vector<8x256xf32>
    %169 = arith.addf %162, %168 : vector<8x256xf32>
    %170 = vector.broadcast %103 : vector<8x1xf32> to vector<8x256xf32>
    %171 = arith.addf %169, %170 : vector<8x256xf32>
    %172 = vector.broadcast %104 : vector<8x1xf32> to vector<8x256xf32>
    %173 = vector.broadcast %1 : vector<1x256xf32> to vector<8x256xf32>
    %174 = arith.mulf %172, %173 : vector<8x256xf32>
    %175 = arith.addf %171, %174 : vector<8x256xf32>
    %cst_138 = arith.constant dense<0.000000e+00> : vector<8xf32>
    %176 = vector.multi_reduction <add>, %175, %cst_138 [1] : vector<8x256xf32> to vector<8xf32>
    %177 = vector.shape_cast %176 : vector<8xf32> to vector<8x1xf32>
    %cst_139 = arith.constant 2.560000e+02 : f32
    %178 = vector.broadcast %cst_139 : f32 to vector<8x1xf32>
    %179 = arith.divf %177, %178 : vector<8x1xf32>
    %180 = vector.broadcast %179 : vector<8x1xf32> to vector<8x256xf32>
    %181 = arith.subf %175, %180 : vector<8x256xf32>
    %182 = arith.mulf %181, %181 : vector<8x256xf32>
    %cst_140 = arith.constant dense<0.000000e+00> : vector<8xf32>
    %183 = vector.multi_reduction <add>, %182, %cst_140 [1] : vector<8x256xf32> to vector<8xf32>
    %184 = vector.shape_cast %183 : vector<8xf32> to vector<8x1xf32>
    %cst_141 = arith.constant 2.560000e+02 : f32
    %185 = vector.broadcast %cst_141 : f32 to vector<8x1xf32>
    %186 = arith.divf %184, %185 : vector<8x1xf32>
    %cst_142 = arith.constant 9.99999974E-6 : f32
    %187 = vector.broadcast %cst_142 : f32 to vector<8x1xf32>
    %188 = arith.addf %186, %187 : vector<8x1xf32>
    %189 = math.rsqrt %188 : vector<8x1xf32>
    %190 = arith.mulf %106, %189 : vector<8x1xf32>
    %191 = vector.broadcast %190 : vector<8x1xf32> to vector<8x256xf32>
    %192 = arith.mulf %181, %191 : vector<8x256xf32>
    %193 = vector.broadcast %108 : vector<8x1xf32> to vector<8x256xf32>
    %194 = arith.addf %192, %193 : vector<8x256xf32>
    %cst_143 = arith.constant 0.000000e+00 : f32
    %195 = vector.broadcast %cst_143 : f32 to vector<8x256xf32>
    %196 = arith.cmpf oge, %194, %195 : vector<8x256xf32>
    %cst_144 = arith.constant 2.000000e-01 : f32
    %197 = vector.broadcast %cst_144 : f32 to vector<8x256xf32>
    %198 = arith.mulf %197, %194 : vector<8x256xf32>
    %199 = arith.select %196, %194, %198 : vector<8x256xi1>, vector<8x256xf32>
    %c0_145 = arith.constant 0 : index
    %c0_146 = arith.constant 0 : index
    %c0_147 = arith.constant 0 : index
    %200 = vector.load %arg14[%c0_145, %c0_146, %c0_147] : memref<1x8x256xf32, #tpu.memory_space<vmem>>, vector<1x8x256xf32>
    %201 = vector.shape_cast %200 : vector<1x8x256xf32> to vector<8x256xf32>
    %202 = vector.shape_cast %199 : vector<8x256xf32> to vector<1x8x256xf32>
    tpu.vector_store %arg14[%c0_145, %c0_146, %c0_147], %202 {strides = array<i32>} : memref<1x8x256xf32, #tpu.memory_space<vmem>>, vector<1x8x256xf32>,
    return
  }
  func.func @transform_0(%arg0: i32) -> (i32, i32, i32) {
    %c0_i32 = arith.constant 0 : i32
    %c0_i32_0 = arith.constant 0 : i32
    %c0_i32_1 = arith.constant 0 : i32
    return %arg0, %c0_i32, %c0_i32_0 : i32, i32, i32
  }
  func.func @transform_1(%arg0: i32) -> (i32, i32, i32) {
    %c0_i32 = arith.constant 0 : i32
    %c0_i32_0 = arith.constant 0 : i32
    %c0_i32_1 = arith.constant 0 : i32
    return %arg0, %c0_i32, %c0_i32_0 : i32, i32, i32
  }
  func.func @transform_2(%arg0: i32) -> (i32, i32) {
    %c0_i32 = arith.constant 0 : i32
    %c0_i32_0 = arith.constant 0 : i32
    %c0_i32_1 = arith.constant 0 : i32
    return %c0_i32, %c0_i32_0 : i32, i32
  }
  func.func @transform_3(%arg0: i32) -> (i32, i32, i32) {
    %c0_i32 = arith.constant 0 : i32
    %c0_i32_0 = arith.constant 0 : i32
    %c0_i32_1 = arith.constant 0 : i32
    %c0_i32_2 = arith.constant 0 : i32
    return %c0_i32, %c0_i32_0, %c0_i32_1 : i32, i32, i32
  }
  func.func @transform_4(%arg0: i32) -> (i32, i32) {
    %c0_i32 = arith.constant 0 : i32
    %c0_i32_0 = arith.constant 0 : i32
    %c0_i32_1 = arith.constant 0 : i32
    return %c0_i32, %c0_i32_0 : i32, i32
  }
  func.func @transform_5(%arg0: i32) -> (i32, i32) {
    %c0_i32 = arith.constant 0 : i32
    %c0_i32_0 = arith.constant 0 : i32
    %c0_i32_1 = arith.constant 0 : i32
    return %c0_i32, %c0_i32_0 : i32, i32
  }
  func.func @transform_6(%arg0: i32) -> (i32, i32, i32) {
    %c0_i32 = arith.constant 0 : i32
    %c0_i32_0 = arith.constant 0 : i32
    %c0_i32_1 = arith.constant 0 : i32
    return %arg0, %c0_i32, %c0_i32_0 : i32, i32, i32
  }
  func.func @transform_7(%arg0: i32) -> (i32, i32, i32) {
    %c0_i32 = arith.constant 0 : i32
    %c0_i32_0 = arith.constant 0 : i32
    %c0_i32_1 = arith.constant 0 : i32
    return %arg0, %c0_i32, %c0_i32_0 : i32, i32, i32
  }
  func.func @transform_8(%arg0: i32) -> (i32, i32, i32) {
    %c0_i32 = arith.constant 0 : i32
    %c0_i32_0 = arith.constant 0 : i32
    %c0_i32_1 = arith.constant 0 : i32
    %c0_i32_2 = arith.constant 0 : i32
    return %c0_i32, %c0_i32_0, %c0_i32_1 : i32, i32, i32
  }
  func.func @transform_9(%arg0: i32) -> (i32, i32) {
    %c0_i32 = arith.constant 0 : i32
    %c0_i32_0 = arith.constant 0 : i32
    %c0_i32_1 = arith.constant 0 : i32
    return %c0_i32, %c0_i32_0 : i32, i32
  }
  func.func @transform_10(%arg0: i32) -> (i32, i32) {
    %c0_i32 = arith.constant 0 : i32
    %c0_i32_0 = arith.constant 0 : i32
    %c0_i32_1 = arith.constant 0 : i32
    return %c0_i32, %c0_i32_0 : i32, i32
  }
  func.func @transform_11(%arg0: i32) -> (i32, i32, i32) {
    %c0_i32 = arith.constant 0 : i32
    %c0_i32_0 = arith.constant 0 : i32
    %c0_i32_1 = arith.constant 0 : i32
    return %arg0, %c0_i32, %c0_i32_0 : i32, i32, i32
  }
  func.func @transform_12(%arg0: i32) -> (i32, i32, i32) {
    %c0_i32 = arith.constant 0 : i32
    %c0_i32_0 = arith.constant 0 : i32
    %c0_i32_1 = arith.constant 0 : i32
    return %arg0, %c0_i32, %c0_i32_0 : i32, i32, i32
  }
  func.func @transform_13(%arg0: i32) -> (i32, i32, i32) {
    %c0_i32 = arith.constant 0 : i32
    %c0_i32_0 = arith.constant 0 : i32
    %c0_i32_1 = arith.constant 0 : i32
    return %arg0, %c0_i32, %c0_i32_0 : i32, i32, i32
  }
}

</mosaic_0001>

<llo_original>
// kernel: tpu_custom_call.1
$region0: #{tpu_custom_call.1}
  #allocation0 [shape = 'u32[]', space=smem, size = 0x4, offset = 0x4, fixed_abs, tag = 'smem constant byte address 0x4 - core index']
  #allocation1 [shape = 'u32[72,128]{1,0:T(1,128)}', space=vmem, size = 0x9000, scoped, tag = 'internal scratch']
  #allocation2 [shape = 'f32[4,401]{1,0:T(4,128)}', space=vmem, size = 0x2000, scoped, tag = 'scratch operand']
  #allocation3 [shape = 'f32[8,401]{1,0:T(8,128)}', space=vmem, size = 0x4000, scoped, tag = 'scratch operand']
  %s0 = inlined_call_operand.vmem [shape: f32[2,4,256], index: 0, kind: input, shape index: {}]
  %s1 = inlined_call_operand.vmem [shape: f32[2,1,256], index: 1, kind: input, shape index: {}]
  %s2 = inlined_call_operand.vmem [shape: f32[2,256], index: 2, kind: input, shape index: {}]
  %s3 = inlined_call_operand.vmem [shape: f32[9,8,4], index: 3, kind: input, shape index: {}]
  %s4 = inlined_call_operand.vmem [shape: f32[8,1], index: 4, kind: input, shape index: {}]
  %s5 = inlined_call_operand.vmem [shape: f32[8,1], index: 5, kind: input, shape index: {}]
  %s6 = inlined_call_operand.vmem [shape: f32[2,8,1], index: 6, kind: input, shape index: {}]
  %s7 = inlined_call_operand.vmem [shape: f32[2,8,1], index: 7, kind: input, shape index: {}]
  %s8 = inlined_call_operand.vmem [shape: f32[9,8,8], index: 8, kind: input, shape index: {}]
  %s9 = inlined_call_operand.vmem [shape: f32[8,1], index: 9, kind: input, shape index: {}]
  %s10 = inlined_call_operand.vmem [shape: f32[8,1], index: 10, kind: input, shape index: {}]
  %s11 = inlined_call_operand.vmem [shape: f32[2,8,1], index: 11, kind: input, shape index: {}]
  %s12 = inlined_call_operand.vmem [shape: f32[2,8,1], index: 12, kind: input, shape index: {}]
  %s13 = inlined_call_operand.hbm [shape: f32[2,8,256], index: 13, kind: output, shape index: {}]
  %s14 = sld [smem:[#allocation0]]
  $region85: #{tpu_custom_call.1} parent=0
    _
  %s16 = ssub.s32 1, %s14
  %s17 = scalar_select 0, %s16, %s14
  $region1: #{tpu_custom_call.1} parent=0
    #allocation4 [shape = 'u8[16384]{0}', space=vmem, size = 0x4000, scoped, tag = 'output window, operand 0']
    #allocation5 [shape = 's32[2]{0}', space=sflag, size = 0x8, scoped, tag = 'scoped memory for tpu_custom_call.1']
    %18 = vsyncpa [#allocation5], 0
    %s19 = scalar_lea.sflag [#allocation5], 1
    %20 = vsyncpa %s19, 0
    loop: start=0, step=1, limit=4
    $region2: #{tpu_custom_call.1} parent=1 // loop_pre_header
      _
    $region3: #{tpu_custom_call.1} parent=1 // loop_header
      %s22 = sphi 0, %s26
      %p23 = scmp.ge.s32.totalorder %s22, 4
      %s32 = sphi 0, %s34
      %s35 = sphi 0, %s32
      %s36 = sphi 0, %s35
      %s52 = sphi 0, %s36
      %s58 = sphi 0, %s60
      %s61 = sphi 0, %s58
      %s62 = sphi 0, %s61
      %s78 = sphi 0, %s62
      %s82 = sphi 0, %s82
      %s84 = sphi 0, %s82
      %s85 = sphi 0, %s84
      %s99 = sphi 0, %s85
      %s103 = sphi 0, %s103
      %s105 = sphi 0, %s103
      %s106 = sphi 0, %s105
      %s120 = sphi 0, %s106
      %s124 = sphi 0, %s124
      %s126 = sphi 0, %s124
      %s127 = sphi 0, %s126
      %s141 = sphi 0, %s127
      %s145 = sphi 0, %s145
      %s147 = sphi 0, %s145
      %s148 = sphi 0, %s147
      %s162 = sphi 0, %s148
      %s168 = sphi 0, %s170
      %s171 = sphi 0, %s168
      %s172 = sphi 0, %s171
      %s188 = sphi 0, %s172
      %s194 = sphi 0, %s196
      %s197 = sphi 0, %s194
      %s198 = sphi 0, %s197
      %s214 = sphi 0, %s198
      %s218 = sphi 0, %s218
      %s220 = sphi 0, %s218
      %s221 = sphi 0, %s220
      %s235 = sphi 0, %s221
      %s239 = sphi 0, %s239
      %s241 = sphi 0, %s239
      %s242 = sphi 0, %s241
      %s256 = sphi 0, %s242
      %s260 = sphi 0, %s260
      %s262 = sphi 0, %s260
      %s263 = sphi 0, %s262
      %s277 = sphi 0, %s263
      %s283 = sphi 0, %s285
      %s286 = sphi 0, %s283
      %s287 = sphi 0, %s286
      %s303 = sphi 0, %s287
      %s309 = sphi 0, %s311
      %s312 = sphi 0, %s309
      %s313 = sphi 0, %s312
      %s329 = sphi 0, %s313
      %s335 = sphi 0, %s337
      %s338 = sphi 0, %s335
      %s339 = sphi 0, %s338
      %s355 = sphi 0, %s339
    $region4: #{tpu_custom_call.1} parent=1 // loop_header_branch
      %25 = sbr.rel (%p23) target = $region8
    $region5: #{tpu_custom_call.1} parent=1 // loop_body
      %s27 = ssub.s32 %s22, 1
      %s28 = ssub.s32 %s22, 2
      %s29 = sadd.s32 %s22, 1
      %s30 = ssub.s32 %s22, %s29
      %p31 = scmp.eq.s32.totalorder %s30, 0
      %s33 = sadd.s32 %s32, 1
      %s34 = scalar_select %p31, %s32, %s33
      %p37 = pneg %p31
      %p38 = scmp.eq.s32.totalorder %s22, 1
      %p39 = por %p37, %p38
      %p40 = scmp.ne.s32.totalorder %s32, %s35
      %p41 = scmp.eq.s32.totalorder %s22, 0
      %p42 = por %p40, %p41
      %p43 = scmp.ne.s32.totalorder %s32, %s35
      %p44 = scmp.eq.s32.totalorder %s27, 1
      %p45 = por %p43, %p44
      %p46 = scmp.ne.s32.totalorder %s35, %s36
      %p47 = scmp.eq.s32.totalorder %s27, 0
      %p48 = por %p46, %p47
      %p49 = scmp.ne.s32.totalorder %s35, %s36
      %p50 = scmp.eq.s32.totalorder %s28, 1
      %p51 = por %p49, %p50
      %p53 = scmp.ne.s32.totalorder %s36, %s52
      %p54 = scmp.eq.s32.totalorder %s28, 0
      %p55 = por %p53, %p54
      %s56 = ssub.s32 %s22, %s29
      %p57 = scmp.eq.s32.totalorder %s56, 0
      %s59 = sadd.s32 %s58, 1
      %s60 = scalar_select %p57, %s58, %s59
      %p63 = pneg %p57
      %p64 = scmp.eq.s32.totalorder %s22, 1
      %p65 = por %p63, %p64
      %p66 = scmp.ne.s32.totalorder %s58, %s61
      %p67 = scmp.eq.s32.totalorder %s22, 0
      %p68 = por %p66, %p67
      %p69 = scmp.ne.s32.totalorder %s58, %s61
      %p70 = scmp.eq.s32.totalorder %s27, 1
      %p71 = por %p69, %p70
      %p72 = scmp.ne.s32.totalorder %s61, %s62
      %p73 = scmp.eq.s32.totalorder %s27, 0
      %p74 = por %p72, %p73
      %p75 = scmp.ne.s32.totalorder %s61, %s62
      %p76 = scmp.eq.s32.totalorder %s28, 1
      %p77 = por %p75, %p76
      %p79 = scmp.ne.s32.totalorder %s62, %s78
      %p80 = scmp.eq.s32.totalorder %s28, 0
      %p81 = por %p79, %p80
      %s83 = sadd.s32 %s82, 1
      %p86 = scmp.eq.s32.totalorder %s22, 1
      %p87 = scmp.ne.s32.totalorder %s82, %s84
      %p88 = scmp.eq.s32.totalorder %s22, 0
      %p89 = por %p87, %p88
      %p90 = scmp.ne.s32.totalorder %s82, %s84
      %p91 = scmp.eq.s32.totalorder %s27, 1
      %p92 = por %p90, %p91
      %p93 = scmp.ne.s32.totalorder %s84, %s85
      %p94 = scmp.eq.s32.totalorder %s27, 0
      %p95 = por %p93, %p94
      %p96 = scmp.ne.s32.totalorder %s84, %s85
      %p97 = scmp.eq.s32.totalorder %s28, 1
      %p98 = por %p96, %p97
      %p100 = scmp.ne.s32.totalorder %s85, %s99
      %p101 = scmp.eq.s32.totalorder %s28, 0
      %p102 = por %p100, %p101
      %s104 = sadd.s32 %s103, 1
      %p107 = scmp.eq.s32.totalorder %s22, 1
      %p108 = scmp.ne.s32.totalorder %s103, %s105
      %p109 = scmp.eq.s32.totalorder %s22, 0
      %p110 = por %p108, %p109
      %p111 = scmp.ne.s32.totalorder %s103, %s105
      %p112 = scmp.eq.s32.totalorder %s27, 1
      %p113 = por %p111, %p112
      %p114 = scmp.ne.s32.totalorder %s105, %s106
      %p115 = scmp.eq.s32.totalorder %s27, 0
      %p116 = por %p114, %p115
      %p117 = scmp.ne.s32.totalorder %s105, %s106
      %p118 = scmp.eq.s32.totalorder %s28, 1
      %p119 = por %p117, %p118
      %p121 = scmp.ne.s32.totalorder %s106, %s120
      %p122 = scmp.eq.s32.totalorder %s28, 0
      %p123 = por %p121, %p122
      %s125 = sadd.s32 %s124, 1
      %p128 = scmp.eq.s32.totalorder %s22, 1
      %p129 = scmp.ne.s32.totalorder %s124, %s126
      %p130 = scmp.eq.s32.totalorder %s22, 0
      %p131 = por %p129, %p130
      %p132 = scmp.ne.s32.totalorder %s124, %s126
      %p133 = scmp.eq.s32.totalorder %s27, 1
      %p134 = por %p132, %p133
      %p135 = scmp.ne.s32.totalorder %s126, %s127
      %p136 = scmp.eq.s32.totalorder %s27, 0
      %p137 = por %p135, %p136
      %p138 = scmp.ne.s32.totalorder %s126, %s127
      %p139 = scmp.eq.s32.totalorder %s28, 1
      %p140 = por %p138, %p139
      %p142 = scmp.ne.s32.totalorder %s127, %s141
      %p143 = scmp.eq.s32.totalorder %s28, 0
      %p144 = por %p142, %p143
      %s146 = sadd.s32 %s145, 1
      %p149 = scmp.eq.s32.totalorder %s22, 1
      %p150 = scmp.ne.s32.totalorder %s145, %s147
      %p151 = scmp.eq.s32.totalorder %s22, 0
      %p152 = por %p150, %p151
      %p153 = scmp.ne.s32.totalorder %s145, %s147
      %p154 = scmp.eq.s32.totalorder %s27, 1
      %p155 = por %p153, %p154
      %p156 = scmp.ne.s32.totalorder %s147, %s148
      %p157 = scmp.eq.s32.totalorder %s27, 0
      %p158 = por %p156, %p157
      %p159 = scmp.ne.s32.totalorder %s147, %s148
      %p160 = scmp.eq.s32.totalorder %s28, 1
      %p161 = por %p159, %p160
      %p163 = scmp.ne.s32.totalorder %s148, %s162
      %p164 = scmp.eq.s32.totalorder %s28, 0
      %p165 = por %p163, %p164
      %s166 = ssub.s32 %s22, %s29
      %p167 = scmp.eq.s32.totalorder %s166, 0
      %s169 = sadd.s32 %s168, 1
      %s170 = scalar_select %p167, %s168, %s169
      %p173 = pneg %p167
      %p174 = scmp.eq.s32.totalorder %s22, 1
      %p175 = por %p173, %p174
      %p176 = scmp.ne.s32.totalorder %s168, %s171
      %p177 = scmp.eq.s32.totalorder %s22, 0
      %p178 = por %p176, %p177
      %p179 = scmp.ne.s32.totalorder %s168, %s171
      %p180 = scmp.eq.s32.totalorder %s27, 1
      %p181 = por %p179, %p180
      %p182 = scmp.ne.s32.totalorder %s171, %s172
      %p183 = scmp.eq.s32.totalorder %s27, 0
      %p184 = por %p182, %p183
      %p185 = scmp.ne.s32.totalorder %s171, %s172
      %p186 = scmp.eq.s32.totalorder %s28, 1
      %p187 = por %p185, %p186
      %p189 = scmp.ne.s32.totalorder %s172, %s188
      %p190 = scmp.eq.s32.totalorder %s28, 0
      %p191 = por %p189, %p190
      %s192 = ssub.s32 %s22, %s29
      %p193 = scmp.eq.s32.totalorder %s192, 0
      %s195 = sadd.s32 %s194, 1
      %s196 = scalar_select %p193, %s194, %s195
      %p199 = pneg %p193
      %p200 = scmp.eq.s32.totalorder %s22, 1
      %p201 = por %p199, %p200
      %p202 = scmp.ne.s32.totalorder %s194, %s197
      %p203 = scmp.eq.s32.totalorder %s22, 0
      %p204 = por %p202, %p203
      %p205 = scmp.ne.s32.totalorder %s194, %s197
      %p206 = scmp.eq.s32.totalorder %s27, 1
      %p207 = por %p205, %p206
      %p208 = scmp.ne.s32.totalorder %s197, %s198
      %p209 = scmp.eq.s32.totalorder %s27, 0
      %p210 = por %p208, %p209
      %p211 = scmp.ne.s32.totalorder %s197, %s198
      %p212 = scmp.eq.s32.totalorder %s28, 1
      %p213 = por %p211, %p212
      %p215 = scmp.ne.s32.totalorder %s198, %s214
      %p216 = scmp.eq.s32.totalorder %s28, 0
      %p217 = por %p215, %p216
      %s219 = sadd.s32 %s218, 1
      %p222 = scmp.eq.s32.totalorder %s22, 1
      %p223 = scmp.ne.s32.totalorder %s218, %s220
      %p224 = scmp.eq.s32.totalorder %s22, 0
      %p225 = por %p223, %p224
      %p226 = scmp.ne.s32.totalorder %s218, %s220
      %p227 = scmp.eq.s32.totalorder %s27, 1
      %p228 = por %p226, %p227
      %p229 = scmp.ne.s32.totalorder %s220, %s221
      %p230 = scmp.eq.s32.totalorder %s27, 0
      %p231 = por %p229, %p230
      %p232 = scmp.ne.s32.totalorder %s220, %s221
      %p233 = scmp.eq.s32.totalorder %s28, 1
      %p234 = por %p232, %p233
      %p236 = scmp.ne.s32.totalorder %s221, %s235
      %p237 = scmp.eq.s32.totalorder %s28, 0
      %p238 = por %p236, %p237
      %s240 = sadd.s32 %s239, 1
      %p243 = scmp.eq.s32.totalorder %s22, 1
      %p244 = scmp.ne.s32.totalorder %s239, %s241
      %p245 = scmp.eq.s32.totalorder %s22, 0
      %p246 = por %p244, %p245
      %p247 = scmp.ne.s32.totalorder %s239, %s241
      %p248 = scmp.eq.s32.totalorder %s27, 1
      %p249 = por %p247, %p248
      %p250 = scmp.ne.s32.totalorder %s241, %s242
      %p251 = scmp.eq.s32.totalorder %s27, 0
      %p252 = por %p250, %p251
      %p253 = scmp.ne.s32.totalorder %s241, %s242
      %p254 = scmp.eq.s32.totalorder %s28, 1
      %p255 = por %p253, %p254
      %p257 = scmp.ne.s32.totalorder %s242, %s256
      %p258 = scmp.eq.s32.totalorder %s28, 0
      %p259 = por %p257, %p258
      %s261 = sadd.s32 %s260, 1
      %p264 = scmp.eq.s32.totalorder %s22, 1
      %p265 = scmp.ne.s32.totalorder %s260, %s262
      %p266 = scmp.eq.s32.totalorder %s22, 0
      %p267 = por %p265, %p266
      %p268 = scmp.ne.s32.totalorder %s260, %s262
      %p269 = scmp.eq.s32.totalorder %s27, 1
      %p270 = por %p268, %p269
      %p271 = scmp.ne.s32.totalorder %s262, %s263
      %p272 = scmp.eq.s32.totalorder %s27, 0
      %p273 = por %p271, %p272
      %p274 = scmp.ne.s32.totalorder %s262, %s263
      %p275 = scmp.eq.s32.totalorder %s28, 1
      %p276 = por %p274, %p275
      %p278 = scmp.ne.s32.totalorder %s263, %s277
      %p279 = scmp.eq.s32.totalorder %s28, 0
      %p280 = por %p278, %p279
      %s281 = ssub.s32 %s22, %s29
      %p282 = scmp.eq.s32.totalorder %s281, 0
      %s284 = sadd.s32 %s283, 1
      %s285 = scalar_select %p282, %s283, %s284
      %p288 = pneg %p282
      %p289 = scmp.eq.s32.totalorder %s22, 1
      %p290 = por %p288, %p289
      %p291 = scmp.ne.s32.totalorder %s283, %s286
      %p292 = scmp.eq.s32.totalorder %s22, 0
      %p293 = por %p291, %p292
      %p294 = scmp.ne.s32.totalorder %s283, %s286
      %p295 = scmp.eq.s32.totalorder %s27, 1
      %p296 = por %p294, %p295
      %p297 = scmp.ne.s32.totalorder %s286, %s287
      %p298 = scmp.eq.s32.totalorder %s27, 0
      %p299 = por %p297, %p298
      %p300 = scmp.ne.s32.totalorder %s286, %s287
      %p301 = scmp.eq.s32.totalorder %s28, 1
      %p302 = por %p300, %p301
      %p304 = scmp.ne.s32.totalorder %s287, %s303
      %p305 = scmp.eq.s32.totalorder %s28, 0
      %p306 = por %p304, %p305
      %s307 = ssub.s32 %s22, %s29
      %p308 = scmp.eq.s32.totalorder %s307, 0
      %s310 = sadd.s32 %s309, 1
      %s311 = scalar_select %p308, %s309, %s310
      %p314 = pneg %p308
      %p315 = scmp.eq.s32.totalorder %s22, 1
      %p316 = por %p314, %p315
      %p317 = scmp.ne.s32.totalorder %s309, %s312
      %p318 = scmp.eq.s32.totalorder %s22, 0
      %p319 = por %p317, %p318
      %p320 = scmp.ne.s32.totalorder %s309, %s312
      %p321 = scmp.eq.s32.totalorder %s27, 1
      %p322 = por %p320, %p321
      %p323 = scmp.ne.s32.totalorder %s312, %s313
      %p324 = scmp.eq.s32.totalorder %s27, 0
      %p325 = por %p323, %p324
      %p326 = scmp.ne.s32.totalorder %s312, %s313
      %p327 = scmp.eq.s32.totalorder %s28, 1
      %p328 = por %p326, %p327
      %p330 = scmp.ne.s32.totalorder %s313, %s329
      %p331 = scmp.eq.s32.totalorder %s28, 0
      %p332 = por %p330, %p331
      %s333 = ssub.s32 %s22, %s29
      %p334 = scmp.eq.s32.totalorder %s333, 0
      %s336 = sadd.s32 %s335, 1
      %s337 = scalar_select %p334, %s335, %s336
      %p340 = pneg %p334
      %p341 = scmp.eq.s32.totalorder %s22, 1
      %p342 = por %p340, %p341
      %p343 = scmp.ne.s32.totalorder %s335, %s338
      %p344 = scmp.eq.s32.totalorder %s22, 0
      %p345 = por %p343, %p344
      %p346 = scmp.ne.s32.totalorder %s335, %s338
      %p347 = scmp.eq.s32.totalorder %s27, 1
      %p348 = por %p346, %p347
      %p349 = scmp.ne.s32.totalorder %s338, %s339
      %p350 = scmp.eq.s32.totalorder %s27, 0
      %p351 = por %p349, %p350
      %p352 = scmp.ne.s32.totalorder %s338, %s339
      %p353 = scmp.eq.s32.totalorder %s28, 1
      %p354 = por %p352, %p353
      %p356 = scmp.ne.s32.totalorder %s339, %s355
      %p357 = scmp.eq.s32.totalorder %s28, 0
      %p358 = por %p356, %p357
      %p359 = scmp.le.s32.totalorder 1, %s22
      %p360 = scmp.lt.s32.totalorder %s22, 3
      %p361 = pnand %p359, %p360
      %p362 = pneg %p361
      // Predicated region
      $region9: #{tpu_custom_call.1} parent=5 // pred_check
        _
      $region10: #{tpu_custom_call.1} parent=5 // pred_check_branch
        %364 = sbr.rel (%p361) target = $region12
      $region11: #{tpu_custom_call.1} parent=5 // pred_region
        %s365 = ssub.s32 %s22, 1
        // Predicated region
        $region13: #{tpu_custom_call.1} parent=11 // pred_check
          %p366 = pneg %p95
        $region14: #{tpu_custom_call.1} parent=11 // pred_check_branch
          %368 = sbr.rel (%p366) target = $region16
        $region15: #{tpu_custom_call.1} parent=11 // pred_region
          _
        $region16: #{tpu_custom_call.1} parent=11 // pred_fallthru
          _
        // Predicated region
        $region17: #{tpu_custom_call.1} parent=11 // pred_check
          %p369 = pneg %p116
        $region18: #{tpu_custom_call.1} parent=11 // pred_check_branch
          %371 = sbr.rel (%p369) target = $region20
        $region19: #{tpu_custom_call.1} parent=11 // pred_region
          _
        $region20: #{tpu_custom_call.1} parent=11 // pred_fallthru
          _
        // Predicated region
        $region21: #{tpu_custom_call.1} parent=11 // pred_check
          %p372 = pneg %p137
        $region22: #{tpu_custom_call.1} parent=11 // pred_check_branch
          %374 = sbr.rel (%p372) target = $region24
        $region23: #{tpu_custom_call.1} parent=11 // pred_region
          _
        $region24: #{tpu_custom_call.1} parent=11 // pred_fallthru
          _
        // Predicated region
        $region25: #{tpu_custom_call.1} parent=11 // pred_check
          %p375 = pneg %p158
        $region26: #{tpu_custom_call.1} parent=11 // pred_check_branch
          %377 = sbr.rel (%p375) target = $region28
        $region27: #{tpu_custom_call.1} parent=11 // pred_region
          _
        $region28: #{tpu_custom_call.1} parent=11 // pred_fallthru
          _
        // Predicated region
        $region29: #{tpu_custom_call.1} parent=11 // pred_check
          %p378 = pneg %p231
        $region30: #{tpu_custom_call.1} parent=11 // pred_check_branch
          %380 = sbr.rel (%p378) target = $region32
        $region31: #{tpu_custom_call.1} parent=11 // pred_region
          _
        $region32: #{tpu_custom_call.1} parent=11 // pred_fallthru
          _
        // Predicated region
        $region33: #{tpu_custom_call.1} parent=11 // pred_check
          %p381 = pneg %p252
        $region34: #{tpu_custom_call.1} parent=11 // pred_check_branch
          %383 = sbr.rel (%p381) target = $region36
        $region35: #{tpu_custom_call.1} parent=11 // pred_region
          _
        $region36: #{tpu_custom_call.1} parent=11 // pred_fallthru
          _
        // Predicated region
        $region37: #{tpu_custom_call.1} parent=11 // pred_check
          %p384 = pneg %p273
        $region38: #{tpu_custom_call.1} parent=11 // pred_check_branch
          %386 = sbr.rel (%p384) target = $region40
        $region39: #{tpu_custom_call.1} parent=11 // pred_region
          _
        $region40: #{tpu_custom_call.1} parent=11 // pred_fallthru
          _
      $region12: #{tpu_custom_call.1} parent=5 // pred_fallthru
        _
      %p387 = scmp.lt.s32.totalorder %s22, 2
      // Predicated region
      $region41: #{tpu_custom_call.1} parent=5 // pred_check
        %p388 = pneg %p387
      $region42: #{tpu_custom_call.1} parent=5 // pred_check_branch
        %390 = sbr.rel (%p388) target = $region44
      $region43: #{tpu_custom_call.1} parent=5 // pred_region
        // Predicated region
        $region45: #{tpu_custom_call.1} parent=43 // pred_check
          %p391 = pneg %p42
        $region46: #{tpu_custom_call.1} parent=43 // pred_check_branch
          %393 = sbr.rel (%p391) target = $region48
        $region47: #{tpu_custom_call.1} parent=43 // pred_region
          %p394 = scmp.lt.s32.totalorder %s22, 1
          %s395 = scalar_select %p394, %s22, 1
          %s396 = smul.addr %s395, 2
          %s397 = smul.addr %s396, 4
          %s398 = scalar_lea.vmem %s0, %s397
        $region48: #{tpu_custom_call.1} parent=43 // pred_fallthru
          _
        // Predicated region
        $region49: #{tpu_custom_call.1} parent=43 // pred_check
          %p399 = pneg %p68
        $region50: #{tpu_custom_call.1} parent=43 // pred_check_branch
          %401 = sbr.rel (%p399) target = $region52
        $region51: #{tpu_custom_call.1} parent=43 // pred_region
          %p402 = scmp.lt.s32.totalorder %s22, 1
          %s403 = scalar_select %p402, %s22, 1
          %s404 = smul.addr %s403, 2
          %s405 = scalar_lea.vmem %s1, %s404
        $region52: #{tpu_custom_call.1} parent=43 // pred_fallthru
          _
        // Predicated region
        $region53: #{tpu_custom_call.1} parent=43 // pred_check
          %p406 = pneg %p178
        $region54: #{tpu_custom_call.1} parent=43 // pred_check_branch
          %408 = sbr.rel (%p406) target = $region56
        $region55: #{tpu_custom_call.1} parent=43 // pred_region
          %p409 = scmp.lt.s32.totalorder %s22, 1
          %s410 = scalar_select %p409, %s22, 1
          %s411 = smul.addr %s410, 8
          %s412 = scalar_lea.vmem %s6, %s411
        $region56: #{tpu_custom_call.1} parent=43 // pred_fallthru
          _
        // Predicated region
        $region57: #{tpu_custom_call.1} parent=43 // pred_check
          %p413 = pneg %p204
        $region58: #{tpu_custom_call.1} parent=43 // pred_check_branch
          %415 = sbr.rel (%p413) target = $region60
        $region59: #{tpu_custom_call.1} parent=43 // pred_region
          %p416 = scmp.lt.s32.totalorder %s22, 1
          %s417 = scalar_select %p416, %s22, 1
          %s418 = smul.addr %s417, 8
          %s419 = scalar_lea.vmem %s7, %s418
        $region60: #{tpu_custom_call.1} parent=43 // pred_fallthru
          _
        // Predicated region
        $region61: #{tpu_custom_call.1} parent=43 // pred_check
          %p420 = pneg %p293
        $region62: #{tpu_custom_call.1} parent=43 // pred_check_branch
          %422 = sbr.rel (%p420) target = $region64
        $region63: #{tpu_custom_call.1} parent=43 // pred_region
          %p423 = scmp.lt.s32.totalorder %s22, 1
          %s424 = scalar_select %p423, %s22, 1
          %s425 = smul.addr %s424, 8
          %s426 = scalar_lea.vmem %s11, %s425
        $region64: #{tpu_custom_call.1} parent=43 // pred_fallthru
          _
        // Predicated region
        $region65: #{tpu_custom_call.1} parent=43 // pred_check
          %p427 = pneg %p319
        $region66: #{tpu_custom_call.1} parent=43 // pred_check_branch
          %429 = sbr.rel (%p427) target = $region68
        $region67: #{tpu_custom_call.1} parent=43 // pred_region
          %p430 = scmp.lt.s32.totalorder %s22, 1
          %s431 = scalar_select %p430, %s22, 1
          %s432 = smul.addr %s431, 8
          %s433 = scalar_lea.vmem %s12, %s432
        $region68: #{tpu_custom_call.1} parent=43 // pred_fallthru
          _
      $region44: #{tpu_custom_call.1} parent=5 // pred_fallthru
        _
      %p434 = scmp.le.s32.totalorder 1, %s22
      %p435 = scmp.lt.s32.totalorder %s22, 3
      %p436 = pnand %p434, %p435
      %p437 = pneg %p436
      // Predicated region
      $region69: #{tpu_custom_call.1} parent=5 // pred_check
        _
      $region70: #{tpu_custom_call.1} parent=5 // pred_check_branch
        %439 = sbr.rel (%p436) target = $region72
      $region71: #{tpu_custom_call.1} parent=5 // pred_region
        %s440 = ssub.s32 %s22, 1
        %p441 = scmp.lt.s32.totalorder %s27, 1
        %s442 = scalar_select %p441, %s27, 1
        %s443 = smul.addr %s442, 2
        %s444 = smul.addr %s443, 4
        %s445 = scalar_lea.vmem %s0, %s444
        %p446 = pneg %p48
        %p447 = pneg %p45
        %p448 = scmp.lt.s32.totalorder %s27, 1
        %s449 = scalar_select %p448, %s27, 1
        %s450 = smul.addr %s449, 2
        %s451 = scalar_lea.vmem %s1, %s450
        %p452 = pneg %p74
        %p453 = pneg %p71
        %p454 = pneg %p95
        %p455 = pneg %p92
        %p456 = pneg %p116
        %p457 = pneg %p113
        %p458 = pneg %p137
        %p459 = pneg %p134
        %p460 = pneg %p158
        %p461 = pneg %p155
        %p462 = scmp.lt.s32.totalorder %s27, 1
        %s463 = scalar_select %p462, %s27, 1
        %s464 = smul.addr %s463, 8
        %s465 = scalar_lea.vmem %s6, %s464
        %p466 = pneg %p184
        %p467 = pneg %p181
        %p468 = scmp.lt.s32.totalorder %s27, 1
        %s469 = scalar_select %p468, %s27, 1
        %s470 = smul.addr %s469, 8
        %s471 = scalar_lea.vmem %s7, %s470
        %p472 = pneg %p210
        %p473 = pneg %p207
        %p474 = pneg %p231
        %p475 = pneg %p228
        %p476 = pneg %p252
        %p477 = pneg %p249
        %p478 = pneg %p273
        %p479 = pneg %p270
        %p480 = scmp.lt.s32.totalorder %s27, 1
        %s481 = scalar_select %p480, %s27, 1
        %s482 = smul.addr %s481, 8
        %s483 = scalar_lea.vmem %s11, %s482
        %p484 = pneg %p299
        %p485 = pneg %p296
        %p486 = scmp.lt.s32.totalorder %s27, 1
        %s487 = scalar_select %p486, %s27, 1
        %s488 = smul.addr %s487, 8
        %s489 = scalar_lea.vmem %s12, %s488
        %p490 = pneg %p325
        %p491 = pneg %p322
        %p492 = pneg %p351
        %p493 = pneg %p348
        %s494 = sand.u32 %s338, 1
        %s495 = scalar_lea.sflag [#allocation5], %s494
        %s496 = sand.u32 %s338, 1
        %s497 = smul.addr %s496, 16
        %s498 = scalar_lea.vmem [#allocation4], %s497
        %p499 = scmp.lt.s32.totalorder %s27, 1
        %s500 = scalar_select %p499, %s27, 1
        %s501 = smul.addr %s500, 2
        %s502 = smul.addr %s501, 4
        %s503 = scalar_lea.vmem %s0, %s502
        %p504 = scmp.lt.s32.totalorder %s27, 1
        %s505 = scalar_select %p504, %s27, 1
        %s506 = smul.addr %s505, 2
        %s507 = scalar_lea.vmem %s1, %s506
        %p508 = scmp.lt.s32.totalorder %s27, 1
        %s509 = scalar_select %p508, %s27, 1
        %s510 = smul.addr %s509, 8
        %s511 = scalar_lea.vmem %s6, %s510
        %p512 = scmp.lt.s32.totalorder %s27, 1
        %s513 = scalar_select %p512, %s27, 1
        %s514 = smul.addr %s513, 8
        %s515 = scalar_lea.vmem %s7, %s514
        %p516 = scmp.lt.s32.totalorder %s27, 1
        %s517 = scalar_select %p516, %s27, 1
        %s518 = smul.addr %s517, 8
        %s519 = scalar_lea.vmem %s11, %s518
        %p520 = scmp.lt.s32.totalorder %s27, 1
        %s521 = scalar_select %p520, %s27, 1
        %s522 = smul.addr %s521, 8
        %s523 = scalar_lea.vmem %s12, %s522
        %v524 = vld [vmem:[%s507] sm:$0x3]
        %v525 = vld [vmem:[%s2] ss:$2 sm:$0x3]
        %s526 = scalar_lea.vmem %s2, 1
        %v527 = vld [vmem:[%s526] ss:$2 sm:$0x3]
        %v528 = vld [vmem:[%s503] sm:$0xff]
        %v529 = vld [vmem:[%s4] sm:$0xff]
        %v530 = vld [vmem:[%s5] sm:$0xff]
        %v531 = vld [vmem:[%s511] sm:$0xff]
        %v532 = vld [vmem:[%s515] sm:$0xff]
        %533 = vst [vmem:[#allocation2] sm:$0xff] 0.0
        %vm534 = vcmask 1043456
        %vm535 = vcmask 138244
        %vm536 = vmor %vm535, %vm534
        %537 = vst.msk [vmem:[#allocation2 + $0x8] sm:$0xff] %vm536, 0.0
        %538 = vst [vmem:[#allocation2 + $0x4] sm:$0xff] %v528
        %v539 = vld [vmem:[#allocation2] sm:$0xff]
        %v540 = vld [vmem:[#allocation2 + $0x8] sm:$0xf]
        %v542 = vperm.slane %v525, 0
        %v543 = vperm.slane %v525, 1
        %v544 = vrot.slane %v543, 4
        %v545 = vsel %vm534, %v542, %v544
        %546 = vrot.lane.b32.xlu0 %v545, 111
        %v547 = vpop.permute.xlu0 %546
        %v548 = vrot.slane %v547, 4
        %vm549 = vcmask 908288
        %v550 = vsel %vm549, %v548, %v547
        %v553 = vmul.f32 %v539, %v550
        %v554 = vmul.f32 %v540, %v548
        %v555 = vld [vmem:[%s3] sm:$0xff]
        %s556 = scalar_lea.vmem %s3, 8
        %v557 = vld [vmem:[%s556] sm:$0xff]
        %560 = vst [vmem:[#allocation1] ss:$2 sm:$0xff] %v539
        %s561 = scalar_lea.vmem [#allocation1], 16
        %562 = vst [vmem:[%s561] ss:$2 sm:$0xff] %v540
        %v563 = vld.sshfl [vmem:[#allocation1] sm:$0xff pattern:$0x75316420]
        %v564 = vld.sshfl [vmem:[#allocation1 + $0x8] sm:$0xff pattern:$0x75316420]
        %v565 = vld.sshfl [vmem:[#allocation1 + $0x10] sm:$0xff pattern:$0x75316420]
        %566 = vrot.lane.b32.xlu0 %v563, 16
        %v567 = vpop.permute.xlu0 %566
        %568 = vrot.lane.b32.xlu0 %v564, 16
        %v569 = vpop.permute.xlu0 %568
        %570 = vrot.lane.b32.xlu0 %v565, 16
        %v571 = vpop.permute.xlu0 %570
        %vm572 = vcmask 130048
        %v573 = vsel %vm572, %v567, %v569
        %v574 = vsel %vm572, %v569, %v571
        %vm575 = vcmask 31744
        %v577 = vsel %vm575, %v557, 0
        %v579 = vsel %vm534, %v573, 0
        %v581 = vsel %vm534, %v574, 0
        %583 = vmatpush.msra.mxu0 0.0
        %584 = vmatpush.msra.mxu0 0.0
        %585 = vmatpush.msra.mxu0 0.0
        %586 = vmatpush.msra.mxu0 0.0
        %587 = vmatpush.msra.mxu0 0.0
        %588 = vmatpush.msra.mxu0 0.0
        %589 = vmatpush.msra.mxu0 0.0
        %590 = vmatpush.msra.mxu0 0.0
        %591 = vmatpush.msra.mxu0 0.0
        %592 = vmatpush.msra.mxu0 0.0
        %593 = vmatpush.msra.mxu0 0.0
        %594 = vmatpush.msra.mxu0 0.0
        %595 = vmatpush.msra.mxu0 0.0
        %596 = vmatpush.msra.mxu0 0.0
        %597 = vmatpush.msra.mxu0 0.0
        %598 = vmatpush.msra.mxu0 %v579
        %599 = vmatmul.f32.gmra.mxu0 %v577
        %v600 = vpop.f32.mrf.mxu0
        %v601 = vadd.f32 0.0, %v600
        %602 = vdwg.mxu0
        %603 = vmatpush.msra.mxu0 0.0
        %604 = vmatpush.msra.mxu0 0.0
        %605 = vmatpush.msra.mxu0 0.0
        %606 = vmatpush.msra.mxu0 0.0
        %607 = vmatpush.msra.mxu0 0.0
        %608 = vmatpush.msra.mxu0 0.0
        %609 = vmatpush.msra.mxu0 0.0
        %610 = vmatpush.msra.mxu0 0.0
        %611 = vmatpush.msra.mxu0 0.0
        %612 = vmatpush.msra.mxu0 0.0
        %613 = vmatpush.msra.mxu0 0.0
        %614 = vmatpush.msra.mxu0 0.0
        %615 = vmatpush.msra.mxu0 0.0
        %616 = vmatpush.msra.mxu0 0.0
        %617 = vmatpush.msra.mxu0 0.0
        %618 = vmatpush.msra.mxu0 %v581
        %619 = vmatmul.f32.gmra.mxu0 %v577
        %v620 = vpop.f32.mrf.mxu0
        %v621 = vadd.f32 0.0, %v620
        %622 = vdwg.mxu0
        %625 = vst [vmem:[#allocation1] ss:$2 sm:$0xff] %v553
        %s626 = scalar_lea.vmem [#allocation1], 16
        %627 = vst [vmem:[%s626] ss:$2 sm:$0xff] %v554
        %v628 = vld.sshfl [vmem:[#allocation1] sm:$0xff pattern:$0x75316420]
        %v629 = vld.sshfl [vmem:[#allocation1 + $0x8] sm:$0xff pattern:$0x75316420]
        %v630 = vld.sshfl [vmem:[#allocation1 + $0x10] sm:$0xff pattern:$0x75316420]
        %631 = vrot.lane.b32.xlu0 %v628, 17
        %v632 = vpop.permute.xlu0 %631
        %633 = vrot.lane.b32.xlu0 %v629, 17
        %v634 = vpop.permute.xlu0 %633
        %635 = vrot.lane.b32.xlu0 %v630, 17
        %v636 = vpop.permute.xlu0 %635
        %vm637 = vcmask 138240
        %v638 = vsel %vm637, %v632, %v634
        %v639 = vsel %vm637, %v634, %v636
        %v641 = vsel %vm575, %v555, 0
        %v643 = vsel %vm534, %v638, 0
        %v645 = vsel %vm534, %v639, 0
        %647 = vmatpush.msra.mxu0 0.0
        %648 = vmatpush.msra.mxu0 0.0
        %649 = vmatpush.msra.mxu0 0.0
        %650 = vmatpush.msra.mxu0 0.0
        %651 = vmatpush.msra.mxu0 0.0
        %652 = vmatpush.msra.mxu0 0.0
        %653 = vmatpush.msra.mxu0 0.0
        %654 = vmatpush.msra.mxu0 0.0
        %655 = vmatpush.msra.mxu0 0.0
        %656 = vmatpush.msra.mxu0 0.0
        %657 = vmatpush.msra.mxu0 0.0
        %658 = vmatpush.msra.mxu0 0.0
        %659 = vmatpush.msra.mxu0 0.0
        %660 = vmatpush.msra.mxu0 0.0
        %661 = vmatpush.msra.mxu0 0.0
        %662 = vmatpush.msra.mxu0 %v643
        %663 = vmatmul.f32.gmra.mxu0 %v641
        %v664 = vpop.f32.mrf.mxu0
        %v665 = vadd.f32 %v601, %v664
        %666 = vdwg.mxu0
        %667 = vmatpush.msra.mxu0 0.0
        %668 = vmatpush.msra.mxu0 0.0
        %669 = vmatpush.msra.mxu0 0.0
        %670 = vmatpush.msra.mxu0 0.0
        %671 = vmatpush.msra.mxu0 0.0
        %672 = vmatpush.msra.mxu0 0.0
        %673 = vmatpush.msra.mxu0 0.0
        %674 = vmatpush.msra.mxu0 0.0
        %675 = vmatpush.msra.mxu0 0.0
        %676 = vmatpush.msra.mxu0 0.0
        %677 = vmatpush.msra.mxu0 0.0
        %678 = vmatpush.msra.mxu0 0.0
        %679 = vmatpush.msra.mxu0 0.0
        %680 = vmatpush.msra.mxu0 0.0
        %681 = vmatpush.msra.mxu0 0.0
        %682 = vmatpush.msra.mxu0 %v645
        %683 = vmatmul.f32.gmra.mxu0 %v641
        %v684 = vpop.f32.mrf.mxu0
        %v685 = vadd.f32 %v621, %v684
        %686 = vdwg.mxu0
        %v687 = vld [vmem:[#allocation2] sm:$0xff]
        %v688 = vld [vmem:[#allocation2 + $0x8] sm:$0xf]
        %v690 = vperm.slane %v527, 0
        %v691 = vperm.slane %v527, 1
        %v692 = vrot.slane %v691, 4
        %v693 = vsel %vm534, %v690, %v692
        %694 = vrot.lane.b32.xlu0 %v693, 113
        %v695 = vpop.permute.xlu0 %694
        %v696 = vrot.slane %v695, 4
        %vm697 = vcmask 924672
        %v698 = vsel %vm697, %v696, %v695
        %v701 = vmul.f32 %v687, %v698
        %v702 = vmul.f32 %v688, %v696
        %s703 = scalar_lea.vmem %s3, 16
        %v704 = vld [vmem:[%s703] sm:$0xff]
        %707 = vst [vmem:[#allocation1] ss:$2 sm:$0xff] %v701
        %s708 = scalar_lea.vmem [#allocation1], 16
        %709 = vst [vmem:[%s708] ss:$2 sm:$0xff] %v702
        %v710 = vld.sshfl [vmem:[#allocation1] sm:$0xff pattern:$0x75316420]
        %v711 = vld.sshfl [vmem:[#allocation1 + $0x8] sm:$0xff pattern:$0x75316420]
        %v712 = vld.sshfl [vmem:[#allocation1 + $0x10] sm:$0xff pattern:$0x75316420]
        %713 = vrot.lane.b32.xlu0 %v710, 15
        %v714 = vpop.permute.xlu0 %713
        %715 = vrot.lane.b32.xlu0 %v711, 15
        %v716 = vpop.permute.xlu0 %715
        %717 = vrot.lane.b32.xlu0 %v712, 15
        %v718 = vpop.permute.xlu0 %717
        %vm719 = vcmask 121856
        %v720 = vsel %vm719, %v714, %v716
        %v721 = vsel %vm719, %v716, %v718
        %v723 = vsel %vm575, %v704, 0
        %v725 = vsel %vm534, %v720, 0
        %v727 = vsel %vm534, %v721, 0
        %729 = vmatpush.msra.mxu0 0.0
        %730 = vmatpush.msra.mxu0 0.0
        %731 = vmatpush.msra.mxu0 0.0
        %732 = vmatpush.msra.mxu0 0.0
        %733 = vmatpush.msra.mxu0 0.0
        %734 = vmatpush.msra.mxu0 0.0
        %735 = vmatpush.msra.mxu0 0.0
        %736 = vmatpush.msra.mxu0 0.0
        %737 = vmatpush.msra.mxu0 0.0
        %738 = vmatpush.msra.mxu0 0.0
        %739 = vmatpush.msra.mxu0 0.0
        %740 = vmatpush.msra.mxu0 0.0
        %741 = vmatpush.msra.mxu0 0.0
        %742 = vmatpush.msra.mxu0 0.0
        %743 = vmatpush.msra.mxu0 0.0
        %744 = vmatpush.msra.mxu0 %v725
        %745 = vmatmul.f32.gmra.mxu0 %v723
        %v746 = vpop.f32.mrf.mxu0
        %v747 = vadd.f32 0.0, %v746
        %748 = vdwg.mxu0
        %749 = vmatpush.msra.mxu0 0.0
        %750 = vmatpush.msra.mxu0 0.0
        %751 = vmatpush.msra.mxu0 0.0
        %752 = vmatpush.msra.mxu0 0.0
        %753 = vmatpush.msra.mxu0 0.0
        %754 = vmatpush.msra.mxu0 0.0
        %755 = vmatpush.msra.mxu0 0.0
        %756 = vmatpush.msra.mxu0 0.0
        %757 = vmatpush.msra.mxu0 0.0
        %758 = vmatpush.msra.mxu0 0.0
        %759 = vmatpush.msra.mxu0 0.0
        %760 = vmatpush.msra.mxu0 0.0
        %761 = vmatpush.msra.mxu0 0.0
        %762 = vmatpush.msra.mxu0 0.0
        %763 = vmatpush.msra.mxu0 0.0
        %764 = vmatpush.msra.mxu0 %v727
        %765 = vmatmul.f32.gmra.mxu0 %v723
        %v766 = vpop.f32.mrf.mxu0
        %v767 = vadd.f32 0.0, %v766
        %768 = vdwg.mxu0
        %v769 = vadd.f32 %v665, %v747
        %v770 = vadd.f32 %v685, %v767
        %v771 = vld [vmem:[#allocation2] sm:$0xff]
        %v772 = vld [vmem:[#allocation2 + $0x8] sm:$0xf]
        %773 = vrot.lane.b32.xlu0 %v545, 127
        %v774 = vpop.permute.xlu0 %773
        %v775 = vrot.slane %v774, 4
        %vm776 = vcmask 1039360
        %v777 = vsel %vm776, %v775, %v774
        %v780 = vmul.f32 %v771, %v777
        %v781 = vmul.f32 %v772, %v775
        %s782 = scalar_lea.vmem %s3, 24
        %v783 = vld [vmem:[%s782] sm:$0xff]
        %786 = vst [vmem:[#allocation1] ss:$2 sm:$0xff] %v780
        %s787 = scalar_lea.vmem [#allocation1], 16
        %788 = vst [vmem:[%s787] ss:$2 sm:$0xff] %v781
        %v789 = vld.sshfl [vmem:[#allocation1] sm:$0xff pattern:$0x75316420]
        %v790 = vld.sshfl [vmem:[#allocation1 + $0x8] sm:$0xff pattern:$0x75316420]
        %v791 = vld.sshfl [vmem:[#allocation1 + $0x10] sm:$0xff pattern:$0x75316420]
        %792 = vrot.lane.b32.xlu0 %v789, 1
        %v793 = vpop.permute.xlu0 %792
        %794 = vrot.lane.b32.xlu0 %v790, 1
        %v795 = vpop.permute.xlu0 %794
        %796 = vrot.lane.b32.xlu0 %v791, 1
        %v797 = vpop.permute.xlu0 %796
        %vm798 = vcmask 7168
        %v799 = vsel %vm798, %v793, %v795
        %v800 = vsel %vm798, %v795, %v797
        %v802 = vsel %vm575, %v783, 0
        %v804 = vsel %vm534, %v799, 0
        %v806 = vsel %vm534, %v800, 0
        %808 = vmatpush.msra.mxu0 0.0
        %809 = vmatpush.msra.mxu0 0.0
        %810 = vmatpush.msra.mxu0 0.0
        %811 = vmatpush.msra.mxu0 0.0
        %812 = vmatpush.msra.mxu0 0.0
        %813 = vmatpush.msra.mxu0 0.0
        %814 = vmatpush.msra.mxu0 0.0
        %815 = vmatpush.msra.mxu0 0.0
        %816 = vmatpush.msra.mxu0 0.0
        %817 = vmatpush.msra.mxu0 0.0
        %818 = vmatpush.msra.mxu0 0.0
        %819 = vmatpush.msra.mxu0 0.0
        %820 = vmatpush.msra.mxu0 0.0
        %821 = vmatpush.msra.mxu0 0.0
        %822 = vmatpush.msra.mxu0 0.0
        %823 = vmatpush.msra.mxu0 %v804
        %824 = vmatmul.f32.gmra.mxu0 %v802
        %v825 = vpop.f32.mrf.mxu0
        %v826 = vadd.f32 0.0, %v825
        %827 = vdwg.mxu0
        %828 = vmatpush.msra.mxu0 0.0
        %829 = vmatpush.msra.mxu0 0.0
        %830 = vmatpush.msra.mxu0 0.0
        %831 = vmatpush.msra.mxu0 0.0
        %832 = vmatpush.msra.mxu0 0.0
        %833 = vmatpush.msra.mxu0 0.0
        %834 = vmatpush.msra.mxu0 0.0
        %835 = vmatpush.msra.mxu0 0.0
        %836 = vmatpush.msra.mxu0 0.0
        %837 = vmatpush.msra.mxu0 0.0
        %838 = vmatpush.msra.mxu0 0.0
        %839 = vmatpush.msra.mxu0 0.0
        %840 = vmatpush.msra.mxu0 0.0
        %841 = vmatpush.msra.mxu0 0.0
        %842 = vmatpush.msra.mxu0 0.0
        %843 = vmatpush.msra.mxu0 %v806
        %844 = vmatmul.f32.gmra.mxu0 %v802
        %v845 = vpop.f32.mrf.mxu0
        %v846 = vadd.f32 0.0, %v845
        %847 = vdwg.mxu0
        %v848 = vadd.f32 %v769, %v826
        %v849 = vadd.f32 %v770, %v846
        %v850 = vld [vmem:[#allocation2 + $0x4] sm:$0xff]
        %s851 = scalar_lea.vmem %s3, 32
        %v852 = vld [vmem:[%s851] sm:$0xff]
        %854 = vst [vmem:[#allocation1] ss:$2 sm:$0xff] %v850
        %v855 = vld.sshfl [vmem:[#allocation1] sm:$0xff pattern:$0x75316420]
        %v856 = vld.sshfl [vmem:[#allocation1 + $0x8] sm:$0xff pattern:$0x75316420]
        %v858 = vsel %vm575, %v852, 0
        %v860 = vsel %vm534, %v855, 0
        %v862 = vsel %vm534, %v856, 0
        %864 = vmatpush.msra.mxu0 0.0
        %865 = vmatpush.msra.mxu0 0.0
        %866 = vmatpush.msra.mxu0 0.0
        %867 = vmatpush.msra.mxu0 0.0
        %868 = vmatpush.msra.mxu0 0.0
        %869 = vmatpush.msra.mxu0 0.0
        %870 = vmatpush.msra.mxu0 0.0
        %871 = vmatpush.msra.mxu0 0.0
        %872 = vmatpush.msra.mxu0 0.0
        %873 = vmatpush.msra.mxu0 0.0
        %874 = vmatpush.msra.mxu0 0.0
        %875 = vmatpush.msra.mxu0 0.0
        %876 = vmatpush.msra.mxu0 0.0
        %877 = vmatpush.msra.mxu0 0.0
        %878 = vmatpush.msra.mxu0 0.0
        %879 = vmatpush.msra.mxu0 %v860
        %880 = vmatmul.f32.gmra.mxu0 %v858
        %v881 = vpop.f32.mrf.mxu0
        %v882 = vadd.f32 0.0, %v881
        %883 = vdwg.mxu0
        %884 = vmatpush.msra.mxu0 0.0
        %885 = vmatpush.msra.mxu0 0.0
        %886 = vmatpush.msra.mxu0 0.0
        %887 = vmatpush.msra.mxu0 0.0
        %888 = vmatpush.msra.mxu0 0.0
        %889 = vmatpush.msra.mxu0 0.0
        %890 = vmatpush.msra.mxu0 0.0
        %891 = vmatpush.msra.mxu0 0.0
        %892 = vmatpush.msra.mxu0 0.0
        %893 = vmatpush.msra.mxu0 0.0
        %894 = vmatpush.msra.mxu0 0.0
        %895 = vmatpush.msra.mxu0 0.0
        %896 = vmatpush.msra.mxu0 0.0
        %897 = vmatpush.msra.mxu0 0.0
        %898 = vmatpush.msra.mxu0 0.0
        %899 = vmatpush.msra.mxu0 %v862
        %900 = vmatmul.f32.gmra.mxu0 %v858
        %v901 = vpop.f32.mrf.mxu0
        %v902 = vadd.f32 0.0, %v901
        %903 = vdwg.mxu0
        %v904 = vadd.f32 %v848, %v882
        %v905 = vadd.f32 %v849, %v902
        %v906 = vld [vmem:[#allocation2 + $0x4] sm:$0xff]
        %v907 = vld [vmem:[#allocation2 + $0xc] sm:$0xf]
        %908 = vrot.lane.b32.xlu0 %v693, 1
        %v909 = vpop.permute.xlu0 %908
        %v910 = vrot.slane %v909, 4
        %v911 = vsel %vm798, %v910, %v909
        %v914 = vmul.f32 %v906, %v911
        %v915 = vmul.f32 %v907, %v910
        %s916 = scalar_lea.vmem %s3, 40
        %v917 = vld [vmem:[%s916] sm:$0xff]
        %920 = vst [vmem:[#allocation1] ss:$2 sm:$0xff] %v914
        %s921 = scalar_lea.vmem [#allocation1], 16
        %922 = vst [vmem:[%s921] ss:$2 sm:$0xff] %v915
        %v923 = vld.sshfl [vmem:[#allocation1] sm:$0xff pattern:$0x75316420]
        %v924 = vld.sshfl [vmem:[#allocation1 + $0x8] sm:$0xff pattern:$0x75316420]
        %v925 = vld.sshfl [vmem:[#allocation1 + $0x10] sm:$0xff pattern:$0x75316420]
        %926 = vrot.lane.b32.xlu0 %v923, 127
        %v927 = vpop.permute.xlu0 %926
        %928 = vrot.lane.b32.xlu0 %v924, 127
        %v929 = vpop.permute.xlu0 %928
        %930 = vrot.lane.b32.xlu0 %v925, 127
        %v931 = vpop.permute.xlu0 %930
        %v932 = vsel %vm776, %v927, %v929
        %v933 = vsel %vm776, %v929, %v931
        %v935 = vsel %vm575, %v917, 0
        %v937 = vsel %vm534, %v932, 0
        %v939 = vsel %vm534, %v933, 0
        %941 = vmatpush.msra.mxu0 0.0
        %942 = vmatpush.msra.mxu0 0.0
        %943 = vmatpush.msra.mxu0 0.0
        %944 = vmatpush.msra.mxu0 0.0
        %945 = vmatpush.msra.mxu0 0.0
        %946 = vmatpush.msra.mxu0 0.0
        %947 = vmatpush.msra.mxu0 0.0
        %948 = vmatpush.msra.mxu0 0.0
        %949 = vmatpush.msra.mxu0 0.0
        %950 = vmatpush.msra.mxu0 0.0
        %951 = vmatpush.msra.mxu0 0.0
        %952 = vmatpush.msra.mxu0 0.0
        %953 = vmatpush.msra.mxu0 0.0
        %954 = vmatpush.msra.mxu0 0.0
        %955 = vmatpush.msra.mxu0 0.0
        %956 = vmatpush.msra.mxu0 %v937
        %957 = vmatmul.f32.gmra.mxu0 %v935
        %v958 = vpop.f32.mrf.mxu0
        %v959 = vadd.f32 0.0, %v958
        %960 = vdwg.mxu0
        %961 = vmatpush.msra.mxu0 0.0
        %962 = vmatpush.msra.mxu0 0.0
        %963 = vmatpush.msra.mxu0 0.0
        %964 = vmatpush.msra.mxu0 0.0
        %965 = vmatpush.msra.mxu0 0.0
        %966 = vmatpush.msra.mxu0 0.0
        %967 = vmatpush.msra.mxu0 0.0
        %968 = vmatpush.msra.mxu0 0.0
        %969 = vmatpush.msra.mxu0 0.0
        %970 = vmatpush.msra.mxu0 0.0
        %971 = vmatpush.msra.mxu0 0.0
        %972 = vmatpush.msra.mxu0 0.0
        %973 = vmatpush.msra.mxu0 0.0
        %974 = vmatpush.msra.mxu0 0.0
        %975 = vmatpush.msra.mxu0 0.0
        %976 = vmatpush.msra.mxu0 %v939
        %977 = vmatmul.f32.gmra.mxu0 %v935
        %v978 = vpop.f32.mrf.mxu0
        %v979 = vadd.f32 0.0, %v978
        %980 = vdwg.mxu0
        %v981 = vadd.f32 %v904, %v959
        %v982 = vadd.f32 %v905, %v979
        %v983 = vld [vmem:[#allocation2 + $0x4] sm:$0xff]
        %v984 = vld [vmem:[#allocation2 + $0xc] sm:$0xf]
        %985 = vrot.lane.b32.xlu0 %v545, 15
        %v986 = vpop.permute.xlu0 %985
        %v987 = vrot.slane %v986, 4
        %v988 = vsel %vm719, %v987, %v986
        %v991 = vmul.f32 %v983, %v988
        %v992 = vmul.f32 %v984, %v987
        %s993 = scalar_lea.vmem %s3, 48
        %v994 = vld [vmem:[%s993] sm:$0xff]
        %997 = vst [vmem:[#allocation1] ss:$2 sm:$0xff] %v991
        %s998 = scalar_lea.vmem [#allocation1], 16
        %999 = vst [vmem:[%s998] ss:$2 sm:$0xff] %v992
        %v1000 = vld.sshfl [vmem:[#allocation1] sm:$0xff pattern:$0x75316420]
        %v1001 = vld.sshfl [vmem:[#allocation1 + $0x8] sm:$0xff pattern:$0x75316420]
        %v1002 = vld.sshfl [vmem:[#allocation1 + $0x10] sm:$0xff pattern:$0x75316420]
        %1003 = vrot.lane.b32.xlu0 %v1000, 113
        %v1004 = vpop.permute.xlu0 %1003
        %1005 = vrot.lane.b32.xlu0 %v1001, 113
        %v1006 = vpop.permute.xlu0 %1005
        %1007 = vrot.lane.b32.xlu0 %v1002, 113
        %v1008 = vpop.permute.xlu0 %1007
        %v1009 = vsel %vm697, %v1004, %v1006
        %v1010 = vsel %vm697, %v1006, %v1008
        %v1012 = vsel %vm575, %v994, 0
        %v1014 = vsel %vm534, %v1009, 0
        %v1016 = vsel %vm534, %v1010, 0
        %1018 = vmatpush.msra.mxu0 0.0
        %1019 = vmatpush.msra.mxu0 0.0
        %1020 = vmatpush.msra.mxu0 0.0
        %1021 = vmatpush.msra.mxu0 0.0
        %1022 = vmatpush.msra.mxu0 0.0
        %1023 = vmatpush.msra.mxu0 0.0
        %1024 = vmatpush.msra.mxu0 0.0
        %1025 = vmatpush.msra.mxu0 0.0
        %1026 = vmatpush.msra.mxu0 0.0
        %1027 = vmatpush.msra.mxu0 0.0
        %1028 = vmatpush.msra.mxu0 0.0
        %1029 = vmatpush.msra.mxu0 0.0
        %1030 = vmatpush.msra.mxu0 0.0
        %1031 = vmatpush.msra.mxu0 0.0
        %1032 = vmatpush.msra.mxu0 0.0
        %1033 = vmatpush.msra.mxu0 %v1014
        %1034 = vmatmul.f32.gmra.mxu0 %v1012
        %v1035 = vpop.f32.mrf.mxu0
        %v1036 = vadd.f32 0.0, %v1035
        %1037 = vdwg.mxu0
        %1038 = vmatpush.msra.mxu0 0.0
        %1039 = vmatpush.msra.mxu0 0.0
        %1040 = vmatpush.msra.mxu0 0.0
        %1041 = vmatpush.msra.mxu0 0.0
        %1042 = vmatpush.msra.mxu0 0.0
        %1043 = vmatpush.msra.mxu0 0.0
        %1044 = vmatpush.msra.mxu0 0.0
        %1045 = vmatpush.msra.mxu0 0.0
        %1046 = vmatpush.msra.mxu0 0.0
        %1047 = vmatpush.msra.mxu0 0.0
        %1048 = vmatpush.msra.mxu0 0.0
        %1049 = vmatpush.msra.mxu0 0.0
        %1050 = vmatpush.msra.mxu0 0.0
        %1051 = vmatpush.msra.mxu0 0.0
        %1052 = vmatpush.msra.mxu0 0.0
        %1053 = vmatpush.msra.mxu0 %v1016
        %1054 = vmatmul.f32.gmra.mxu0 %v1012
        %v1055 = vpop.f32.mrf.mxu0
        %v1056 = vadd.f32 0.0, %v1055
        %1057 = vdwg.mxu0
        %v1058 = vadd.f32 %v981, %v1036
        %v1059 = vadd.f32 %v982, %v1056
        %v1060 = vld [vmem:[#allocation2 + $0x4] sm:$0xff]
        %v1061 = vld [vmem:[#allocation2 + $0xc] sm:$0xf]
        %s1062 = scalar_lea.vmem %s3, 56
        %v1063 = vld [vmem:[%s1062] sm:$0xff]
        %1066 = vst [vmem:[#allocation1] ss:$2 sm:$0xff] %v1060
        %s1067 = scalar_lea.vmem [#allocation1], 16
        %1068 = vst [vmem:[%s1067] ss:$2 sm:$0xff] %v1061
        %v1069 = vld.sshfl [vmem:[#allocation1] sm:$0xff pattern:$0x75316420]
        %v1070 = vld.sshfl [vmem:[#allocation1 + $0x8] sm:$0xff pattern:$0x75316420]
        %v1071 = vld.sshfl [vmem:[#allocation1 + $0x10] sm:$0xff pattern:$0x75316420]
        %1072 = vrot.lane.b32.xlu0 %v1069, 112
        %v1073 = vpop.permute.xlu0 %1072
        %1074 = vrot.lane.b32.xlu0 %v1070, 112
        %v1075 = vpop.permute.xlu0 %1074
        %1076 = vrot.lane.b32.xlu0 %v1071, 112
        %v1077 = vpop.permute.xlu0 %1076
        %vm1078 = vcmask 916480
        %v1079 = vsel %vm1078, %v1073, %v1075
        %v1080 = vsel %vm1078, %v1075, %v1077
        %v1082 = vsel %vm575, %v1063, 0
        %v1084 = vsel %vm534, %v1079, 0
        %v1086 = vsel %vm534, %v1080, 0
        %1088 = vmatpush.msra.mxu0 0.0
        %1089 = vmatpush.msra.mxu0 0.0
        %1090 = vmatpush.msra.mxu0 0.0
        %1091 = vmatpush.msra.mxu0 0.0
        %1092 = vmatpush.msra.mxu0 0.0
        %1093 = vmatpush.msra.mxu0 0.0
        %1094 = vmatpush.msra.mxu0 0.0
        %1095 = vmatpush.msra.mxu0 0.0
        %1096 = vmatpush.msra.mxu0 0.0
        %1097 = vmatpush.msra.mxu0 0.0
        %1098 = vmatpush.msra.mxu0 0.0
        %1099 = vmatpush.msra.mxu0 0.0
        %1100 = vmatpush.msra.mxu0 0.0
        %1101 = vmatpush.msra.mxu0 0.0
        %1102 = vmatpush.msra.mxu0 0.0
        %1103 = vmatpush.msra.mxu0 %v1084
        %1104 = vmatmul.f32.gmra.mxu0 %v1082
        %v1105 = vpop.f32.mrf.mxu0
        %v1106 = vadd.f32 0.0, %v1105
        %1107 = vdwg.mxu0
        %1108 = vmatpush.msra.mxu0 0.0
        %1109 = vmatpush.msra.mxu0 0.0
        %1110 = vmatpush.msra.mxu0 0.0
        %1111 = vmatpush.msra.mxu0 0.0
        %1112 = vmatpush.msra.mxu0 0.0
        %1113 = vmatpush.msra.mxu0 0.0
        %1114 = vmatpush.msra.mxu0 0.0
        %1115 = vmatpush.msra.mxu0 0.0
        %1116 = vmatpush.msra.mxu0 0.0
        %1117 = vmatpush.msra.mxu0 0.0
        %1118 = vmatpush.msra.mxu0 0.0
        %1119 = vmatpush.msra.mxu0 0.0
        %1120 = vmatpush.msra.mxu0 0.0
        %1121 = vmatpush.msra.mxu0 0.0
        %1122 = vmatpush.msra.mxu0 0.0
        %1123 = vmatpush.msra.mxu0 %v1086
        %1124 = vmatmul.f32.gmra.mxu0 %v1082
        %v1125 = vpop.f32.mrf.mxu0
        %v1126 = vadd.f32 0.0, %v1125
        %1127 = vdwg.mxu0
        %v1128 = vadd.f32 %v1058, %v1106
        %v1129 = vadd.f32 %v1059, %v1126
        %v1130 = vld [vmem:[#allocation2 + $0x4] sm:$0xff]
        %v1131 = vld [vmem:[#allocation2 + $0xc] sm:$0xf]
        %1132 = vrot.lane.b32.xlu0 %v693, 17
        %v1133 = vpop.permute.xlu0 %1132
        %v1134 = vrot.slane %v1133, 4
        %v1135 = vsel %vm637, %v1134, %v1133
        %v1138 = vmul.f32 %v1130, %v1135
        %v1139 = vmul.f32 %v1131, %v1134
        %s1140 = scalar_lea.vmem %s3, 64
        %v1141 = vld [vmem:[%s1140] sm:$0xff]
        %1144 = vst [vmem:[#allocation1] ss:$2 sm:$0xff] %v1138
        %s1145 = scalar_lea.vmem [#allocation1], 16
        %1146 = vst [vmem:[%s1145] ss:$2 sm:$0xff] %v1139
        %v1147 = vld.sshfl [vmem:[#allocation1] sm:$0xff pattern:$0x75316420]
        %v1148 = vld.sshfl [vmem:[#allocation1 + $0x8] sm:$0xff pattern:$0x75316420]
        %v1149 = vld.sshfl [vmem:[#allocation1 + $0x10] sm:$0xff pattern:$0x75316420]
        %1150 = vrot.lane.b32.xlu0 %v1147, 111
        %v1151 = vpop.permute.xlu0 %1150
        %1152 = vrot.lane.b32.xlu0 %v1148, 111
        %v1153 = vpop.permute.xlu0 %1152
        %1154 = vrot.lane.b32.xlu0 %v1149, 111
        %v1155 = vpop.permute.xlu0 %1154
        %v1156 = vsel %vm549, %v1151, %v1153
        %v1157 = vsel %vm549, %v1153, %v1155
        %v1159 = vsel %vm575, %v1141, 0
        %v1161 = vsel %vm534, %v1156, 0
        %v1163 = vsel %vm534, %v1157, 0
        %1165 = vmatpush.msra.mxu0 0.0
        %1166 = vmatpush.msra.mxu0 0.0
        %1167 = vmatpush.msra.mxu0 0.0
        %1168 = vmatpush.msra.mxu0 0.0
        %1169 = vmatpush.msra.mxu0 0.0
        %1170 = vmatpush.msra.mxu0 0.0
        %1171 = vmatpush.msra.mxu0 0.0
        %1172 = vmatpush.msra.mxu0 0.0
        %1173 = vmatpush.msra.mxu0 0.0
        %1174 = vmatpush.msra.mxu0 0.0
        %1175 = vmatpush.msra.mxu0 0.0
        %1176 = vmatpush.msra.mxu0 0.0
        %1177 = vmatpush.msra.mxu0 0.0
        %1178 = vmatpush.msra.mxu0 0.0
        %1179 = vmatpush.msra.mxu0 0.0
        %1180 = vmatpush.msra.mxu0 %v1161
        %1181 = vmatmul.f32.gmra.mxu0 %v1159
        %v1182 = vpop.f32.mrf.mxu0
        %v1183 = vadd.f32 0.0, %v1182
        %1184 = vdwg.mxu0
        %1185 = vmatpush.msra.mxu0 0.0
        %1186 = vmatpush.msra.mxu0 0.0
        %1187 = vmatpush.msra.mxu0 0.0
        %1188 = vmatpush.msra.mxu0 0.0
        %1189 = vmatpush.msra.mxu0 0.0
        %1190 = vmatpush.msra.mxu0 0.0
        %1191 = vmatpush.msra.mxu0 0.0
        %1192 = vmatpush.msra.mxu0 0.0
        %1193 = vmatpush.msra.mxu0 0.0
        %1194 = vmatpush.msra.mxu0 0.0
        %1195 = vmatpush.msra.mxu0 0.0
        %1196 = vmatpush.msra.mxu0 0.0
        %1197 = vmatpush.msra.mxu0 0.0
        %1198 = vmatpush.msra.mxu0 0.0
        %1199 = vmatpush.msra.mxu0 0.0
        %1200 = vmatpush.msra.mxu0 %v1163
        %1201 = vmatmul.f32.gmra.mxu0 %v1159
        %v1202 = vpop.f32.mrf.mxu0
        %v1203 = vadd.f32 0.0, %v1202
        %1204 = vdwg.mxu0
        %v1205 = vadd.f32 %v1128, %v1183
        %v1206 = vadd.f32 %v1129, %v1203
        %1208 = vset.pattern.permute.xlu0 0
        %1209 = vperm.xlu0 %1208, %v529
        %v1210 = vpop.permute.xlu0 %1209
        %v1212 = vadd.f32 %v1205, %v1210
        %v1213 = vadd.f32 %v1206, %v1210
        %1215 = vset.pattern.permute.xlu0 0
        %1216 = vperm.xlu0 %1215, %v530
        %v1217 = vpop.permute.xlu0 %1216
        %v1220 = vperm.slane %v524, 0
        %v1221 = vperm.slane %v524, 1
        %v1224 = vmul.f32 %v1217, %v1220
        %v1225 = vmul.f32 %v1217, %v1221
        %v1226 = vadd.f32 %v1212, %v1224
        %v1227 = vadd.f32 %v1213, %v1225
        %v1228 = vadd.f32 %v1226, %v1227
        %1229 = vadd.xlane.f32.xlu0 %v1228
        %v1230 = vpop.xlane.xlu0 %1229
        %v1231 = vrcp.pop 256.0
        %v1232 = vmul.f32 256.0, %v1231
        %v1233 = vsub.f32 1.0, %v1232
        %v1234 = vmul.f32 %v1231, %v1233
        %v1235 = vadd.f32 %v1231, %v1234
        %vm1236 = vweird.f32 %v1231
        %v1237 = vsel %vm1236, %v1231, %v1235
        %v1238 = vmul.f32 %v1230, %v1237
        %v1239 = vsub.f32 %v1226, %v1238
        %v1240 = vsub.f32 %v1227, %v1238
        %v1241 = vmul.f32 %v1239, %v1239
        %v1242 = vmul.f32 %v1240, %v1240
        %v1243 = vadd.f32 %v1241, %v1242
        %1244 = vadd.xlane.f32.xlu0 %v1243
        %v1245 = vpop.xlane.xlu0 %1244
        %v1246 = vmul.f32 %v1245, %v1237
        %v1247 = vadd.f32 %v1246, 1e-05
        %v1248 = vrsqrt.pop %v1247
        %v1249 = vmul.f32 %v1248, %v1247
        %v1250 = vmul.f32 %v1249, %v1248
        %v1251 = vmul.f32 0.5, %v1250
        %v1252 = vsub.f32 1.5, %v1251
        %v1253 = vmul.f32 %v1248, %v1252
        %vm1254 = vweird.f32 %v1247
        %vm1255 = vweird.f32 %v1248
        %vm1256 = vmor %vm1254, %vm1255
        %v1257 = vsel %vm1256, %v1248, %v1253
        %v1258 = vmul.f32 %v531, %v1257
        %1260 = vset.pattern.permute.xlu0 0
        %1261 = vperm.xlu0 %1260, %v1258
        %v1262 = vpop.permute.xlu0 %1261
        %v1264 = vmul.f32 %v1239, %v1262
        %v1265 = vmul.f32 %v1240, %v1262
        %1267 = vset.pattern.permute.xlu0 0
        %1268 = vperm.xlu0 %1267, %v532
        %v1269 = vpop.permute.xlu0 %1268
        %v1271 = vadd.f32 %v1264, %v1269
        %v1272 = vadd.f32 %v1265, %v1269
        %vm1273 = vcmp.ge.f32.partialorder %v1271, 0.0
        %vm1274 = vcmp.ge.f32.partialorder %v1272, 0.0
        %v1275 = vmul.f32 %v1271, 0.2
        %v1276 = vmul.f32 %v1272, 0.2
        %v1277 = vsel %vm1273, %v1271, %v1275
        %v1278 = vsel %vm1274, %v1272, %v1276
        %v1279 = vld [vmem:[%s9] sm:$0xff]
        %v1280 = vld [vmem:[%s10] sm:$0xff]
        %v1281 = vld [vmem:[%s519] sm:$0xff]
        %v1282 = vld [vmem:[%s523] sm:$0xff]
        %1283 = vst [vmem:[#allocation3] sm:$0xff] 0.0
        %1284 = vst [vmem:[#allocation3 + $0x8] sm:$0xff] 0.0
        %1285 = vst [vmem:[#allocation3 + $0x10] sm:$0xff] 0.0
        %1286 = vst.msk [vmem:[#allocation3 + $0x18] sm:$0xff] %vm637, 0.0
        %1287 = vst [vmem:[#allocation3 + $0x8] sm:$0xff] %v1277
        %1288 = vst [vmem:[#allocation3 + $0x10] sm:$0xff] %v1278
        %v1289 = vld [vmem:[#allocation3] sm:$0xff]
        %v1290 = vld [vmem:[#allocation3 + $0x8] sm:$0xff]
        %v1291 = vld [vmem:[#allocation3 + $0x10] sm:$0xff]
        %1292 = vrot.lane.b32.xlu0 %v542, 111
        %v1293 = vpop.permute.xlu0 %1292
        %1294 = vrot.lane.b32.xlu0 %v543, 111
        %v1295 = vpop.permute.xlu0 %1294
        %v1296 = vsel %vm549, %v1293, %v1295
        %v1300 = vmul.f32 %v1289, %v1293
        %v1301 = vmul.f32 %v1290, %v1296
        %v1302 = vmul.f32 %v1291, %v1295
        %v1303 = vld [vmem:[%s8] sm:$0xff]
        %s1304 = scalar_lea.vmem %s8, 8
        %v1305 = vld [vmem:[%s1304] sm:$0xff]
        %1309 = vrot.lane.b32.xlu0 %v1289, 16
        %v1310 = vpop.permute.xlu0 %1309
        %1311 = vrot.lane.b32.xlu0 %v1290, 16
        %v1312 = vpop.permute.xlu0 %1311
        %1313 = vrot.lane.b32.xlu0 %v1291, 16
        %v1314 = vpop.permute.xlu0 %1313
        %v1315 = vsel %vm572, %v1310, %v1312
        %v1316 = vsel %vm572, %v1312, %v1314
        %vm1319 = vcmask 64512
        %v1321 = vsel %vm1319, %v1305, 0
        %1323 = vmatpush.msra.mxu0 0.0
        %1324 = vmatpush.msra.mxu0 0.0
        %1325 = vmatpush.msra.mxu0 0.0
        %1326 = vmatpush.msra.mxu0 0.0
        %1327 = vmatpush.msra.mxu0 0.0
        %1328 = vmatpush.msra.mxu0 0.0
        %1329 = vmatpush.msra.mxu0 0.0
        %1330 = vmatpush.msra.mxu0 0.0
        %1331 = vmatpush.msra.mxu0 0.0
        %1332 = vmatpush.msra.mxu0 0.0
        %1333 = vmatpush.msra.mxu0 0.0
        %1334 = vmatpush.msra.mxu0 0.0
        %1335 = vmatpush.msra.mxu0 0.0
        %1336 = vmatpush.msra.mxu0 0.0
        %1337 = vmatpush.msra.mxu0 0.0
        %1338 = vmatpush.msra.mxu0 %v1315
        %1339 = vmatmul.f32.gmra.mxu0 %v1321
        %v1340 = vpop.f32.mrf.mxu0
        %v1341 = vadd.f32 0.0, %v1340
        %1342 = vdwg.mxu0
        %1343 = vmatpush.msra.mxu0 0.0
        %1344 = vmatpush.msra.mxu0 0.0
        %1345 = vmatpush.msra.mxu0 0.0
        %1346 = vmatpush.msra.mxu0 0.0
        %1347 = vmatpush.msra.mxu0 0.0
        %1348 = vmatpush.msra.mxu0 0.0
        %1349 = vmatpush.msra.mxu0 0.0
        %1350 = vmatpush.msra.mxu0 0.0
        %1351 = vmatpush.msra.mxu0 0.0
        %1352 = vmatpush.msra.mxu0 0.0
        %1353 = vmatpush.msra.mxu0 0.0
        %1354 = vmatpush.msra.mxu0 0.0
        %1355 = vmatpush.msra.mxu0 0.0
        %1356 = vmatpush.msra.mxu0 0.0
        %1357 = vmatpush.msra.mxu0 0.0
        %1358 = vmatpush.msra.mxu0 %v1316
        %1359 = vmatmul.f32.gmra.mxu0 %v1321
        %v1360 = vpop.f32.mrf.mxu0
        %v1361 = vadd.f32 0.0, %v1360
        %1362 = vdwg.mxu0
        %1366 = vrot.lane.b32.xlu0 %v1300, 17
        %v1367 = vpop.permute.xlu0 %1366
        %1368 = vrot.lane.b32.xlu0 %v1301, 17
        %v1369 = vpop.permute.xlu0 %1368
        %1370 = vrot.lane.b32.xlu0 %v1302, 17
        %v1371 = vpop.permute.xlu0 %1370
        %v1372 = vsel %vm637, %v1367, %v1369
        %v1373 = vsel %vm637, %v1369, %v1371
        %v1377 = vsel %vm1319, %v1303, 0
        %1379 = vmatpush.msra.mxu0 0.0
        %1380 = vmatpush.msra.mxu0 0.0
        %1381 = vmatpush.msra.mxu0 0.0
        %1382 = vmatpush.msra.mxu0 0.0
        %1383 = vmatpush.msra.mxu0 0.0
        %1384 = vmatpush.msra.mxu0 0.0
        %1385 = vmatpush.msra.mxu0 0.0
        %1386 = vmatpush.msra.mxu0 0.0
        %1387 = vmatpush.msra.mxu0 0.0
        %1388 = vmatpush.msra.mxu0 0.0
        %1389 = vmatpush.msra.mxu0 0.0
        %1390 = vmatpush.msra.mxu0 0.0
        %1391 = vmatpush.msra.mxu0 0.0
        %1392 = vmatpush.msra.mxu0 0.0
        %1393 = vmatpush.msra.mxu0 0.0
        %1394 = vmatpush.msra.mxu0 %v1372
        %1395 = vmatmul.f32.gmra.mxu0 %v1377
        %v1396 = vpop.f32.mrf.mxu0
        %v1397 = vadd.f32 %v1341, %v1396
        %1398 = vdwg.mxu0
        %1399 = vmatpush.msra.mxu0 0.0
        %1400 = vmatpush.msra.mxu0 0.0
        %1401 = vmatpush.msra.mxu0 0.0
        %1402 = vmatpush.msra.mxu0 0.0
        %1403 = vmatpush.msra.mxu0 0.0
        %1404 = vmatpush.msra.mxu0 0.0
        %1405 = vmatpush.msra.mxu0 0.0
        %1406 = vmatpush.msra.mxu0 0.0
        %1407 = vmatpush.msra.mxu0 0.0
        %1408 = vmatpush.msra.mxu0 0.0
        %1409 = vmatpush.msra.mxu0 0.0
        %1410 = vmatpush.msra.mxu0 0.0
        %1411 = vmatpush.msra.mxu0 0.0
        %1412 = vmatpush.msra.mxu0 0.0
        %1413 = vmatpush.msra.mxu0 0.0
        %1414 = vmatpush.msra.mxu0 %v1373
        %1415 = vmatmul.f32.gmra.mxu0 %v1377
        %v1416 = vpop.f32.mrf.mxu0
        %v1417 = vadd.f32 %v1361, %v1416
        %1418 = vdwg.mxu0
        %1419 = vrot.lane.b32.xlu0 %v690, 113
        %v1420 = vpop.permute.xlu0 %1419
        %1421 = vrot.lane.b32.xlu0 %v691, 113
        %v1422 = vpop.permute.xlu0 %1421
        %v1423 = vsel %vm697, %v1420, %v1422
        %v1427 = vmul.f32 %v1289, %v1420
        %v1428 = vmul.f32 %v1290, %v1423
        %v1429 = vmul.f32 %v1291, %v1422
        %s1430 = scalar_lea.vmem %s8, 16
        %v1431 = vld [vmem:[%s1430] sm:$0xff]
        %1435 = vrot.lane.b32.xlu0 %v1427, 15
        %v1436 = vpop.permute.xlu0 %1435
        %1437 = vrot.lane.b32.xlu0 %v1428, 15
        %v1438 = vpop.permute.xlu0 %1437
        %1439 = vrot.lane.b32.xlu0 %v1429, 15
        %v1440 = vpop.permute.xlu0 %1439
        %v1441 = vsel %vm719, %v1436, %v1438
        %v1442 = vsel %vm719, %v1438, %v1440
        %v1446 = vsel %vm1319, %v1431, 0
        %1448 = vmatpush.msra.mxu0 0.0
        %1449 = vmatpush.msra.mxu0 0.0
        %1450 = vmatpush.msra.mxu0 0.0
        %1451 = vmatpush.msra.mxu0 0.0
        %1452 = vmatpush.msra.mxu0 0.0
        %1453 = vmatpush.msra.mxu0 0.0
        %1454 = vmatpush.msra.mxu0 0.0
        %1455 = vmatpush.msra.mxu0 0.0
        %1456 = vmatpush.msra.mxu0 0.0
        %1457 = vmatpush.msra.mxu0 0.0
        %1458 = vmatpush.msra.mxu0 0.0
        %1459 = vmatpush.msra.mxu0 0.0
        %1460 = vmatpush.msra.mxu0 0.0
        %1461 = vmatpush.msra.mxu0 0.0
        %1462 = vmatpush.msra.mxu0 0.0
        %1463 = vmatpush.msra.mxu0 %v1441
        %1464 = vmatmul.f32.gmra.mxu0 %v1446
        %v1465 = vpop.f32.mrf.mxu0
        %v1466 = vadd.f32 0.0, %v1465
        %1467 = vdwg.mxu0
        %1468 = vmatpush.msra.mxu0 0.0
        %1469 = vmatpush.msra.mxu0 0.0
        %1470 = vmatpush.msra.mxu0 0.0
        %1471 = vmatpush.msra.mxu0 0.0
        %1472 = vmatpush.msra.mxu0 0.0
        %1473 = vmatpush.msra.mxu0 0.0
        %1474 = vmatpush.msra.mxu0 0.0
        %1475 = vmatpush.msra.mxu0 0.0
        %1476 = vmatpush.msra.mxu0 0.0
        %1477 = vmatpush.msra.mxu0 0.0
        %1478 = vmatpush.msra.mxu0 0.0
        %1479 = vmatpush.msra.mxu0 0.0
        %1480 = vmatpush.msra.mxu0 0.0
        %1481 = vmatpush.msra.mxu0 0.0
        %1482 = vmatpush.msra.mxu0 0.0
        %1483 = vmatpush.msra.mxu0 %v1442
        %1484 = vmatmul.f32.gmra.mxu0 %v1446
        %v1485 = vpop.f32.mrf.mxu0
        %v1486 = vadd.f32 0.0, %v1485
        %1487 = vdwg.mxu0
        %v1488 = vadd.f32 %v1397, %v1466
        %v1489 = vadd.f32 %v1417, %v1486
        %1490 = vrot.lane.b32.xlu0 %v542, 127
        %v1491 = vpop.permute.xlu0 %1490
        %1492 = vrot.lane.b32.xlu0 %v543, 127
        %v1493 = vpop.permute.xlu0 %1492
        %v1494 = vsel %vm776, %v1491, %v1493
        %v1498 = vmul.f32 %v1289, %v1491
        %v1499 = vmul.f32 %v1290, %v1494
        %v1500 = vmul.f32 %v1291, %v1493
        %s1501 = scalar_lea.vmem %s8, 24
        %v1502 = vld [vmem:[%s1501] sm:$0xff]
        %1506 = vrot.lane.b32.xlu0 %v1498, 1
        %v1507 = vpop.permute.xlu0 %1506
        %1508 = vrot.lane.b32.xlu0 %v1499, 1
        %v1509 = vpop.permute.xlu0 %1508
        %1510 = vrot.lane.b32.xlu0 %v1500, 1
        %v1511 = vpop.permute.xlu0 %1510
        %v1512 = vsel %vm798, %v1507, %v1509
        %v1513 = vsel %vm798, %v1509, %v1511
        %v1517 = vsel %vm1319, %v1502, 0
        %1519 = vmatpush.msra.mxu0 0.0
        %1520 = vmatpush.msra.mxu0 0.0
        %1521 = vmatpush.msra.mxu0 0.0
        %1522 = vmatpush.msra.mxu0 0.0
        %1523 = vmatpush.msra.mxu0 0.0
        %1524 = vmatpush.msra.mxu0 0.0
        %1525 = vmatpush.msra.mxu0 0.0
        %1526 = vmatpush.msra.mxu0 0.0
        %1527 = vmatpush.msra.mxu0 0.0
        %1528 = vmatpush.msra.mxu0 0.0
        %1529 = vmatpush.msra.mxu0 0.0
        %1530 = vmatpush.msra.mxu0 0.0
        %1531 = vmatpush.msra.mxu0 0.0
        %1532 = vmatpush.msra.mxu0 0.0
        %1533 = vmatpush.msra.mxu0 0.0
        %1534 = vmatpush.msra.mxu0 %v1512
        %1535 = vmatmul.f32.gmra.mxu0 %v1517
        %v1536 = vpop.f32.mrf.mxu0
        %v1537 = vadd.f32 0.0, %v1536
        %1538 = vdwg.mxu0
        %1539 = vmatpush.msra.mxu0 0.0
        %1540 = vmatpush.msra.mxu0 0.0
        %1541 = vmatpush.msra.mxu0 0.0
        %1542 = vmatpush.msra.mxu0 0.0
        %1543 = vmatpush.msra.mxu0 0.0
        %1544 = vmatpush.msra.mxu0 0.0
        %1545 = vmatpush.msra.mxu0 0.0
        %1546 = vmatpush.msra.mxu0 0.0
        %1547 = vmatpush.msra.mxu0 0.0
        %1548 = vmatpush.msra.mxu0 0.0
        %1549 = vmatpush.msra.mxu0 0.0
        %1550 = vmatpush.msra.mxu0 0.0
        %1551 = vmatpush.msra.mxu0 0.0
        %1552 = vmatpush.msra.mxu0 0.0
        %1553 = vmatpush.msra.mxu0 0.0
        %1554 = vmatpush.msra.mxu0 %v1513
        %1555 = vmatmul.f32.gmra.mxu0 %v1517
        %v1556 = vpop.f32.mrf.mxu0
        %v1557 = vadd.f32 0.0, %v1556
        %1558 = vdwg.mxu0
        %v1559 = vadd.f32 %v1488, %v1537
        %v1560 = vadd.f32 %v1489, %v1557
        %s1561 = scalar_lea.vmem %s8, 32
        %v1562 = vld [vmem:[%s1561] sm:$0xff]
        %v1564 = vsel %vm1319, %v1562, 0
        %1566 = vmatpush.msra.mxu0 0.0
        %1567 = vmatpush.msra.mxu0 0.0
        %1568 = vmatpush.msra.mxu0 0.0
        %1569 = vmatpush.msra.mxu0 0.0
        %1570 = vmatpush.msra.mxu0 0.0
        %1571 = vmatpush.msra.mxu0 0.0
        %1572 = vmatpush.msra.mxu0 0.0
        %1573 = vmatpush.msra.mxu0 0.0
        %1574 = vmatpush.msra.mxu0 0.0
        %1575 = vmatpush.msra.mxu0 0.0
        %1576 = vmatpush.msra.mxu0 0.0
        %1577 = vmatpush.msra.mxu0 0.0
        %1578 = vmatpush.msra.mxu0 0.0
        %1579 = vmatpush.msra.mxu0 0.0
        %1580 = vmatpush.msra.mxu0 0.0
        %1581 = vmatpush.msra.mxu0 %v1290
        %1582 = vmatmul.f32.gmra.mxu0 %v1564
        %v1583 = vpop.f32.mrf.mxu0
        %v1584 = vadd.f32 0.0, %v1583
        %1585 = vdwg.mxu0
        %1586 = vmatpush.msra.mxu0 0.0
        %1587 = vmatpush.msra.mxu0 0.0
        %1588 = vmatpush.msra.mxu0 0.0
        %1589 = vmatpush.msra.mxu0 0.0
        %1590 = vmatpush.msra.mxu0 0.0
        %1591 = vmatpush.msra.mxu0 0.0
        %1592 = vmatpush.msra.mxu0 0.0
        %1593 = vmatpush.msra.mxu0 0.0
        %1594 = vmatpush.msra.mxu0 0.0
        %1595 = vmatpush.msra.mxu0 0.0
        %1596 = vmatpush.msra.mxu0 0.0
        %1597 = vmatpush.msra.mxu0 0.0
        %1598 = vmatpush.msra.mxu0 0.0
        %1599 = vmatpush.msra.mxu0 0.0
        %1600 = vmatpush.msra.mxu0 0.0
        %1601 = vmatpush.msra.mxu0 %v1291
        %1602 = vmatmul.f32.gmra.mxu0 %v1564
        %v1603 = vpop.f32.mrf.mxu0
        %v1604 = vadd.f32 0.0, %v1603
        %1605 = vdwg.mxu0
        %v1606 = vadd.f32 %v1559, %v1584
        %v1607 = vadd.f32 %v1560, %v1604
        %v1608 = vld [vmem:[#allocation3 + $0x8] sm:$0xff]
        %v1609 = vld [vmem:[#allocation3 + $0x10] sm:$0xff]
        %v1610 = vld [vmem:[#allocation3 + $0x18] sm:$0xff]
        %1611 = vrot.lane.b32.xlu0 %v690, 1
        %v1612 = vpop.permute.xlu0 %1611
        %1613 = vrot.lane.b32.xlu0 %v691, 1
        %v1614 = vpop.permute.xlu0 %1613
        %v1615 = vsel %vm798, %v1612, %v1614
        %v1619 = vmul.f32 %v1608, %v1612
        %v1620 = vmul.f32 %v1609, %v1615
        %v1621 = vmul.f32 %v1610, %v1614
        %s1622 = scalar_lea.vmem %s8, 40
        %v1623 = vld [vmem:[%s1622] sm:$0xff]
        %1627 = vrot.lane.b32.xlu0 %v1619, 127
        %v1628 = vpop.permute.xlu0 %1627
        %1629 = vrot.lane.b32.xlu0 %v1620, 127
        %v1630 = vpop.permute.xlu0 %1629
        %1631 = vrot.lane.b32.xlu0 %v1621, 127
        %v1632 = vpop.permute.xlu0 %1631
        %v1633 = vsel %vm776, %v1628, %v1630
        %v1634 = vsel %vm776, %v1630, %v1632
        %v1638 = vsel %vm1319, %v1623, 0
        %1640 = vmatpush.msra.mxu0 0.0
        %1641 = vmatpush.msra.mxu0 0.0
        %1642 = vmatpush.msra.mxu0 0.0
        %1643 = vmatpush.msra.mxu0 0.0
        %1644 = vmatpush.msra.mxu0 0.0
        %1645 = vmatpush.msra.mxu0 0.0
        %1646 = vmatpush.msra.mxu0 0.0
        %1647 = vmatpush.msra.mxu0 0.0
        %1648 = vmatpush.msra.mxu0 0.0
        %1649 = vmatpush.msra.mxu0 0.0
        %1650 = vmatpush.msra.mxu0 0.0
        %1651 = vmatpush.msra.mxu0 0.0
        %1652 = vmatpush.msra.mxu0 0.0
        %1653 = vmatpush.msra.mxu0 0.0
        %1654 = vmatpush.msra.mxu0 0.0
        %1655 = vmatpush.msra.mxu0 %v1633
        %1656 = vmatmul.f32.gmra.mxu0 %v1638
        %v1657 = vpop.f32.mrf.mxu0
        %v1658 = vadd.f32 0.0, %v1657
        %1659 = vdwg.mxu0
        %1660 = vmatpush.msra.mxu0 0.0
        %1661 = vmatpush.msra.mxu0 0.0
        %1662 = vmatpush.msra.mxu0 0.0
        %1663 = vmatpush.msra.mxu0 0.0
        %1664 = vmatpush.msra.mxu0 0.0
        %1665 = vmatpush.msra.mxu0 0.0
        %1666 = vmatpush.msra.mxu0 0.0
        %1667 = vmatpush.msra.mxu0 0.0
        %1668 = vmatpush.msra.mxu0 0.0
        %1669 = vmatpush.msra.mxu0 0.0
        %1670 = vmatpush.msra.mxu0 0.0
        %1671 = vmatpush.msra.mxu0 0.0
        %1672 = vmatpush.msra.mxu0 0.0
        %1673 = vmatpush.msra.mxu0 0.0
        %1674 = vmatpush.msra.mxu0 0.0
        %1675 = vmatpush.msra.mxu0 %v1634
        %1676 = vmatmul.f32.gmra.mxu0 %v1638
        %v1677 = vpop.f32.mrf.mxu0
        %v1678 = vadd.f32 0.0, %v1677
        %1679 = vdwg.mxu0
        %v1680 = vadd.f32 %v1606, %v1658
        %v1681 = vadd.f32 %v1607, %v1678
        %1682 = vrot.lane.b32.xlu0 %v542, 15
        %v1683 = vpop.permute.xlu0 %1682
        %1684 = vrot.lane.b32.xlu0 %v543, 15
        %v1685 = vpop.permute.xlu0 %1684
        %v1686 = vsel %vm719, %v1683, %v1685
        %v1690 = vmul.f32 %v1608, %v1683
        %v1691 = vmul.f32 %v1609, %v1686
        %v1692 = vmul.f32 %v1610, %v1685
        %s1693 = scalar_lea.vmem %s8, 48
        %v1694 = vld [vmem:[%s1693] sm:$0xff]
        %1698 = vrot.lane.b32.xlu0 %v1690, 113
        %v1699 = vpop.permute.xlu0 %1698
        %1700 = vrot.lane.b32.xlu0 %v1691, 113
        %v1701 = vpop.permute.xlu0 %1700
        %1702 = vrot.lane.b32.xlu0 %v1692, 113
        %v1703 = vpop.permute.xlu0 %1702
        %v1704 = vsel %vm697, %v1699, %v1701
        %v1705 = vsel %vm697, %v1701, %v1703
        %v1709 = vsel %vm1319, %v1694, 0
        %1711 = vmatpush.msra.mxu0 0.0
        %1712 = vmatpush.msra.mxu0 0.0
        %1713 = vmatpush.msra.mxu0 0.0
        %1714 = vmatpush.msra.mxu0 0.0
        %1715 = vmatpush.msra.mxu0 0.0
        %1716 = vmatpush.msra.mxu0 0.0
        %1717 = vmatpush.msra.mxu0 0.0
        %1718 = vmatpush.msra.mxu0 0.0
        %1719 = vmatpush.msra.mxu0 0.0
        %1720 = vmatpush.msra.mxu0 0.0
        %1721 = vmatpush.msra.mxu0 0.0
        %1722 = vmatpush.msra.mxu0 0.0
        %1723 = vmatpush.msra.mxu0 0.0
        %1724 = vmatpush.msra.mxu0 0.0
        %1725 = vmatpush.msra.mxu0 0.0
        %1726 = vmatpush.msra.mxu0 %v1704
        %1727 = vmatmul.f32.gmra.mxu0 %v1709
        %v1728 = vpop.f32.mrf.mxu0
        %v1729 = vadd.f32 0.0, %v1728
        %1730 = vdwg.mxu0
        %1731 = vmatpush.msra.mxu0 0.0
        %1732 = vmatpush.msra.mxu0 0.0
        %1733 = vmatpush.msra.mxu0 0.0
        %1734 = vmatpush.msra.mxu0 0.0
        %1735 = vmatpush.msra.mxu0 0.0
        %1736 = vmatpush.msra.mxu0 0.0
        %1737 = vmatpush.msra.mxu0 0.0
        %1738 = vmatpush.msra.mxu0 0.0
        %1739 = vmatpush.msra.mxu0 0.0
        %1740 = vmatpush.msra.mxu0 0.0
        %1741 = vmatpush.msra.mxu0 0.0
        %1742 = vmatpush.msra.mxu0 0.0
        %1743 = vmatpush.msra.mxu0 0.0
        %1744 = vmatpush.msra.mxu0 0.0
        %1745 = vmatpush.msra.mxu0 0.0
        %1746 = vmatpush.msra.mxu0 %v1705
        %1747 = vmatmul.f32.gmra.mxu0 %v1709
        %v1748 = vpop.f32.mrf.mxu0
        %v1749 = vadd.f32 0.0, %v1748
        %1750 = vdwg.mxu0
        %v1751 = vadd.f32 %v1680, %v1729
        %v1752 = vadd.f32 %v1681, %v1749
        %s1753 = scalar_lea.vmem %s8, 56
        %v1754 = vld [vmem:[%s1753] sm:$0xff]
        %1758 = vrot.lane.b32.xlu0 %v1608, 112
        %v1759 = vpop.permute.xlu0 %1758
        %1760 = vrot.lane.b32.xlu0 %v1609, 112
        %v1761 = vpop.permute.xlu0 %1760
        %1762 = vrot.lane.b32.xlu0 %v1610, 112
        %v1763 = vpop.permute.xlu0 %1762
        %v1764 = vsel %vm1078, %v1759, %v1761
        %v1765 = vsel %vm1078, %v1761, %v1763
        %v1769 = vsel %vm1319, %v1754, 0
        %1771 = vmatpush.msra.mxu0 0.0
        %1772 = vmatpush.msra.mxu0 0.0
        %1773 = vmatpush.msra.mxu0 0.0
        %1774 = vmatpush.msra.mxu0 0.0
        %1775 = vmatpush.msra.mxu0 0.0
        %1776 = vmatpush.msra.mxu0 0.0
        %1777 = vmatpush.msra.mxu0 0.0
        %1778 = vmatpush.msra.mxu0 0.0
        %1779 = vmatpush.msra.mxu0 0.0
        %1780 = vmatpush.msra.mxu0 0.0
        %1781 = vmatpush.msra.mxu0 0.0
        %1782 = vmatpush.msra.mxu0 0.0
        %1783 = vmatpush.msra.mxu0 0.0
        %1784 = vmatpush.msra.mxu0 0.0
        %1785 = vmatpush.msra.mxu0 0.0
        %1786 = vmatpush.msra.mxu0 %v1764
        %1787 = vmatmul.f32.gmra.mxu0 %v1769
        %v1788 = vpop.f32.mrf.mxu0
        %v1789 = vadd.f32 0.0, %v1788
        %1790 = vdwg.mxu0
        %1791 = vmatpush.msra.mxu0 0.0
        %1792 = vmatpush.msra.mxu0 0.0
        %1793 = vmatpush.msra.mxu0 0.0
        %1794 = vmatpush.msra.mxu0 0.0
        %1795 = vmatpush.msra.mxu0 0.0
        %1796 = vmatpush.msra.mxu0 0.0
        %1797 = vmatpush.msra.mxu0 0.0
        %1798 = vmatpush.msra.mxu0 0.0
        %1799 = vmatpush.msra.mxu0 0.0
        %1800 = vmatpush.msra.mxu0 0.0
        %1801 = vmatpush.msra.mxu0 0.0
        %1802 = vmatpush.msra.mxu0 0.0
        %1803 = vmatpush.msra.mxu0 0.0
        %1804 = vmatpush.msra.mxu0 0.0
        %1805 = vmatpush.msra.mxu0 0.0
        %1806 = vmatpush.msra.mxu0 %v1765
        %1807 = vmatmul.f32.gmra.mxu0 %v1769
        %v1808 = vpop.f32.mrf.mxu0
        %v1809 = vadd.f32 0.0, %v1808
        %1810 = vdwg.mxu0
        %v1811 = vadd.f32 %v1751, %v1789
        %v1812 = vadd.f32 %v1752, %v1809
        %1813 = vrot.lane.b32.xlu0 %v690, 17
        %v1814 = vpop.permute.xlu0 %1813
        %1815 = vrot.lane.b32.xlu0 %v691, 17
        %v1816 = vpop.permute.xlu0 %1815
        %v1817 = vsel %vm637, %v1814, %v1816
        %v1821 = vmul.f32 %v1608, %v1814
        %v1822 = vmul.f32 %v1609, %v1817
        %v1823 = vmul.f32 %v1610, %v1816
        %s1824 = scalar_lea.vmem %s8, 64
        %v1825 = vld [vmem:[%s1824] sm:$0xff]
        %1829 = vrot.lane.b32.xlu0 %v1821, 111
        %v1830 = vpop.permute.xlu0 %1829
        %1831 = vrot.lane.b32.xlu0 %v1822, 111
        %v1832 = vpop.permute.xlu0 %1831
        %1833 = vrot.lane.b32.xlu0 %v1823, 111
        %v1834 = vpop.permute.xlu0 %1833
        %v1835 = vsel %vm549, %v1830, %v1832
        %v1836 = vsel %vm549, %v1832, %v1834
        %v1840 = vsel %vm1319, %v1825, 0
        %1842 = vmatpush.msra.mxu0 0.0
        %1843 = vmatpush.msra.mxu0 0.0
        %1844 = vmatpush.msra.mxu0 0.0
        %1845 = vmatpush.msra.mxu0 0.0
        %1846 = vmatpush.msra.mxu0 0.0
        %1847 = vmatpush.msra.mxu0 0.0
        %1848 = vmatpush.msra.mxu0 0.0
        %1849 = vmatpush.msra.mxu0 0.0
        %1850 = vmatpush.msra.mxu0 0.0
        %1851 = vmatpush.msra.mxu0 0.0
        %1852 = vmatpush.msra.mxu0 0.0
        %1853 = vmatpush.msra.mxu0 0.0
        %1854 = vmatpush.msra.mxu0 0.0
        %1855 = vmatpush.msra.mxu0 0.0
        %1856 = vmatpush.msra.mxu0 0.0
        %1857 = vmatpush.msra.mxu0 %v1835
        %1858 = vmatmul.f32.gmra.mxu0 %v1840
        %v1859 = vpop.f32.mrf.mxu0
        %v1860 = vadd.f32 0.0, %v1859
        %1861 = vdwg.mxu0
        %1862 = vmatpush.msra.mxu0 0.0
        %1863 = vmatpush.msra.mxu0 0.0
        %1864 = vmatpush.msra.mxu0 0.0
        %1865 = vmatpush.msra.mxu0 0.0
        %1866 = vmatpush.msra.mxu0 0.0
        %1867 = vmatpush.msra.mxu0 0.0
        %1868 = vmatpush.msra.mxu0 0.0
        %1869 = vmatpush.msra.mxu0 0.0
        %1870 = vmatpush.msra.mxu0 0.0
        %1871 = vmatpush.msra.mxu0 0.0
        %1872 = vmatpush.msra.mxu0 0.0
        %1873 = vmatpush.msra.mxu0 0.0
        %1874 = vmatpush.msra.mxu0 0.0
        %1875 = vmatpush.msra.mxu0 0.0
        %1876 = vmatpush.msra.mxu0 0.0
        %1877 = vmatpush.msra.mxu0 %v1836
        %1878 = vmatmul.f32.gmra.mxu0 %v1840
        %v1879 = vpop.f32.mrf.mxu0
        %v1880 = vadd.f32 0.0, %v1879
        %1881 = vdwg.mxu0
        %v1882 = vadd.f32 %v1811, %v1860
        %v1883 = vadd.f32 %v1812, %v1880
        %1885 = vset.pattern.permute.xlu0 0
        %1886 = vperm.xlu0 %1885, %v1279
        %v1887 = vpop.permute.xlu0 %1886
        %v1889 = vadd.f32 %v1882, %v1887
        %v1890 = vadd.f32 %v1883, %v1887
        %1892 = vset.pattern.permute.xlu0 0
        %1893 = vperm.xlu0 %1892, %v1280
        %v1894 = vpop.permute.xlu0 %1893
        %v1896 = vmul.f32 %v1894, %v1220
        %v1897 = vmul.f32 %v1894, %v1221
        %v1898 = vadd.f32 %v1889, %v1896
        %v1899 = vadd.f32 %v1890, %v1897
        %v1900 = vadd.f32 %v1898, %v1899
        %1901 = vadd.xlane.f32.xlu0 %v1900
        %v1902 = vpop.xlane.xlu0 %1901
        %v1903 = vmul.f32 %v1902, %v1237
        %v1904 = vsub.f32 %v1898, %v1903
        %v1905 = vsub.f32 %v1899, %v1903
        %v1906 = vmul.f32 %v1904, %v1904
        %v1907 = vmul.f32 %v1905, %v1905
        %v1908 = vadd.f32 %v1906, %v1907
        %1909 = vadd.xlane.f32.xlu0 %v1908
        %v1910 = vpop.xlane.xlu0 %1909
        %v1911 = vmul.f32 %v1910, %v1237
        %v1912 = vadd.f32 %v1911, 1e-05
        %v1913 = vrsqrt.pop %v1912
        %v1914 = vmul.f32 %v1913, %v1912
        %v1915 = vmul.f32 %v1914, %v1913
        %v1916 = vmul.f32 0.5, %v1915
        %v1917 = vsub.f32 1.5, %v1916
        %v1918 = vmul.f32 %v1913, %v1917
        %vm1919 = vweird.f32 %v1912
        %vm1920 = vweird.f32 %v1913
        %vm1921 = vmor %vm1919, %vm1920
        %v1922 = vsel %vm1921, %v1913, %v1918
        %v1923 = vmul.f32 %v1281, %v1922
        %1925 = vset.pattern.permute.xlu0 0
        %1926 = vperm.xlu0 %1925, %v1923
        %v1927 = vpop.permute.xlu0 %1926
        %v1929 = vmul.f32 %v1904, %v1927
        %v1930 = vmul.f32 %v1905, %v1927
        %1932 = vset.pattern.permute.xlu0 0
        %1933 = vperm.xlu0 %1932, %v1282
        %v1934 = vpop.permute.xlu0 %1933
        %v1936 = vadd.f32 %v1929, %v1934
        %v1937 = vadd.f32 %v1930, %v1934
        %vm1938 = vcmp.ge.f32.partialorder %v1936, 0.0
        %vm1939 = vcmp.ge.f32.partialorder %v1937, 0.0
        %v1940 = vmul.f32 %v1936, 0.2
        %v1941 = vmul.f32 %v1937, 0.2
        %v1942 = vsel %vm1938, %v1936, %v1940
        %v1943 = vsel %vm1939, %v1937, %v1941
        %1944 = vst [vmem:[%s498] sm:$0xff] %v1942
        %1945 = vst [vmem:[%s498 + $0x8] sm:$0xff] %v1943
        %s1946 = sand.u32 %s338, 1
        %s1947 = scalar_lea.sflag [#allocation5], %s1946
        %s1948 = sand.u32 %s338, 1
        %s1949 = smul.addr %s1948, 16
        %s1950 = scalar_lea.vmem [#allocation4], %s1949
        // Predicated region
        $region73: #{tpu_custom_call.1} parent=71 // pred_check
          %p1951 = pneg %p348
        $region74: #{tpu_custom_call.1} parent=71 // pred_check_branch
          %1953 = sbr.rel (%p1951) target = $region76
        $region75: #{tpu_custom_call.1} parent=71 // pred_region
          %1955 = vsyncadd %s1947, 0
          %s1956 = smul.addr %s27, 2
          %s1957 = smul.addr %s1956, 8
          %s1958 = scalar_lea.hbm %s13, %s1957
          %s1960 = sshll.u32 %s1950, 4
          %s1961 = int_to_ptr.vmem [resolvable:$true] %s1960
          %s1962 = sshll.u32 %s1958, 4
          %s1963 = int_to_ptr.hbm [resolvable:$true] %s1962
          %1965 = dma.vmem_to_hbm [thread:$0]  %s1961, 256, %s1963, %s1947
        $region76: #{tpu_custom_call.1} parent=71 // pred_fallthru
          _
      $region72: #{tpu_custom_call.1} parent=5 // pred_fallthru
        _
      %p1966 = scmp.le.s32.totalorder 2, %s22
      // Predicated region
      $region77: #{tpu_custom_call.1} parent=5 // pred_check
        %p1967 = pneg %p1966
      $region78: #{tpu_custom_call.1} parent=5 // pred_check_branch
        %1969 = sbr.rel (%p1967) target = $region80
      $region79: #{tpu_custom_call.1} parent=5 // pred_region
        %s1970 = ssub.s32 %s22, 2
        // Predicated region
        $region81: #{tpu_custom_call.1} parent=79 // pred_check
          %p1971 = pneg %p354
        $region82: #{tpu_custom_call.1} parent=79 // pred_check_branch
          %1973 = sbr.rel (%p1971) target = $region84
        $region83: #{tpu_custom_call.1} parent=79 // pred_region
          %s1974 = sand.u32 %s339, 1
          %s1975 = scalar_lea.sflag [#allocation5], %s1974
          %s1976 = sand.u32 %s339, 1
          %s1977 = smul.addr %s1976, 16
          %s1978 = scalar_lea.vmem [#allocation4], %s1977
          %1980 = dma.done %s1975, 256
        $region84: #{tpu_custom_call.1} parent=79 // pred_fallthru
          _
      $region80: #{tpu_custom_call.1} parent=5 // pred_fallthru
        _
    $region6: #{tpu_custom_call.1} parent=1 // loop_footer
      %s26 = sadd.s32 1, %s22
    $region7: #{tpu_custom_call.1} parent=1 // loop_footer_branch
      %21 = sbr.rel target = $region3
    $region8: #{tpu_custom_call.1} parent=1 // loop_exit
      _
    %1981 = vsyncpa [#allocation5], 1
    %s1982 = scalar_lea.sflag [#allocation5], 1
    %1983 = vsyncpa %s1982, 1

</llo_original>
